<compile_context>
chip_gen: v7x
topology: tpu7x:2x2x1
jax: 0.10.0
libtpu: 0.0.40
codegen_flags: <defaults>
</compile_context>

<pallas_src>
import functools

import jax
import jax.numpy as jnp
from jax.experimental import pallas as pl
from jax.experimental.pallas import tpu as pltpu


_MASK23 = (1 << 23) - 1
_TWO23 = float(1 << 23)


# ----------------------------------------------------------------------------
# Small helpers
# ----------------------------------------------------------------------------
def _vmem_limit_bytes():
    """Per-generation scoped-VMEM limit: 3/4 of the chip's reported VMEM.

    v5e/v6e report 128 MiB -> 96 MiB limit; v7x reports 64 MiB per TensorCore
    -> 48 MiB.  (Review items 5/6: no unconditional 64 MiB clamp any more.)
    """
    cap = 64 * 1024 * 1024
    try:
        info = pltpu.get_tpu_info()
        cap = int(getattr(info, "vmem_capacity_bytes", cap)) or cap
    except Exception:  # no TPU visible at trace time -> conservative default
        pass
    return (cap // 4) * 3


def _compiler_params(semantics):
    return pltpu.CompilerParams(
        dimension_semantics=semantics,
        vmem_limit_bytes=_vmem_limit_bytes(),
    )


def _salt(seed, layer_salt, block_id):
    """Mix traced seed, static per-layer salt and grid-block id into one int32."""
    return (seed * jnp.int32(1000003) + jnp.int32(layer_salt & 0x7FFFFFFF)) ^ (
        block_id * jnp.int32(779359))


def _hash_bits23(shape, salt):
    """Stateless 23-bit random integers in [0, 2^23), one per element.

    Pure int32 VPU ops (2-D iota + three xor-shift/multiply avalanche rounds),
    so it lowers identically under Mosaic and interpret mode.  Three rounds
    (was two) to remove lane-adjacent structure flagged in review.
    # TODO(synk): torch.bernoulli's RNG stream cannot be reproduced bit-exactly;
    # masks are drawn from this stateless hash instead (same distribution).
    """
    r = jax.lax.broadcasted_iota(jnp.int32, shape, 0)
    c = jax.lax.broadcasted_iota(jnp.int32, shape, 1)
    x = salt ^ (r * jnp.int32(1013904223)) ^ (c * jnp.int32(1664525))
    for m in (0x045D9F3B, 0x2C1B3C6D, 0x297A2D39):
        x = x ^ ((x >> 15) & jnp.int32(0x1FFFF))
        x = x * jnp.int32(m)
    x = x ^ ((x >> 16) & jnp.int32(0xFFFF))
    return x & jnp.int32(_MASK23)


def _pick_batch_tile(b):
    """Largest batch tile that still leaves >=2 grid steps (v7x megacore)."""
    for t in (8, 4, 2, 1):
        if b % t == 0 and b // t >= 2:
            return t
    for t in (8, 4, 2, 1):
        if b % t == 0:
            return t
    return 1


def _pick_row_tile(mp):
    for t in (128, 64, 32, 16, 8):
        if mp % t == 0 and mp // t >= 2:
            return t
    return mp


# ----------------------------------------------------------------------------
# Fused conv stage kernel:
#   3x3 conv (padding=1) + bias + ReLU [+ 2x2 maxpool] [+ InattentionDropout]
# ----------------------------------------------------------------------------
def _conv_stage_kernel(seed_ref, *refs, patch_input, tb, H, W, cin, cout,
                       pool, num_stacks, dropout_p, layer_salt):
    it = iter(refs)
    x_ref = next(it)
    w_ref = next(it)
    b_ref = next(it)
    if num_stacks > 0:
        aw_ref = next(it)
        ab_ref = next(it)
        alpha_ref = next(it)
    o_ref = next(it)
    acc_ref = next(it)
    xpad_ref = None if patch_input else next(it)

    rows = tb * H * W

    if patch_input:
        # Pre-built (tb, H, W, 9*cin) patch (conv1): ONE MXU matmul, K = 9*cin.
        patch = x_ref[...].reshape(rows, 9 * cin)
        acc_ref[...] = jnp.dot(patch, w_ref[...],
                               preferred_element_type=jnp.float32)
    else:
        # In-kernel halo (review item 4): interior sits at sublane offset 8 so
        # the big copy is tile-aligned; only the thin halo strips are zeroed
        # every step (cheap and safe under megacore core-sharding).
        wp = W + 16
        zdt = jnp.bfloat16
        xpad_ref[:, 0:1, :, :] = jnp.zeros((tb, 1, wp, cin), zdt)
        xpad_ref[:, H + 1:H + 2, :, :] = jnp.zeros((tb, 1, wp, cin), zdt)
        xpad_ref[:, :, 0:8, :] = jnp.zeros((tb, H + 2, 8, cin), zdt)
        xpad_ref[:, :, W + 8:wp, :] = jnp.zeros((tb, H + 2, 8, cin), zdt)
        xpad_ref[:, 1:H + 1, 8:8 + W, :] = x_ref[...]

        # 9 shifted-tap matmuls accumulated into an f32 VMEM scratch (review
        # item 2: bounded live range, no multi-MB SSA accumulator spills).
        # TODO(synk): the single K=9*Cin matmul (review item 1) requires a
        # minor-dim concatenate of sub-128-lane taps; deferred because its
        # Mosaic lowering support is not guaranteed on all generations.
        for t in range(9):
            dy, dx = divmod(t, 3)
            tap = xpad_ref[:, dy:dy + H, 7 + dx:7 + dx + W, :].reshape(rows, cin)
            contrib = jnp.dot(tap, w_ref[t], preferred_element_type=jnp.float32)
            if t == 0:
                acc_ref[...] = contrib
            else:
                acc_ref[...] += contrib

    y = jnp.maximum(acc_ref[...] + b_ref[...], 0.0)            # bias + ReLU (f32)

    # ---- fused 2x2 maxpool (stride 2), kept in VMEM (no HBM round trip).
    if pool:
        ho, wo = H // 2, W // 2
        y = y.reshape(tb, ho, 2, W, cout)
        y = jnp.max(y, axis=2)
        y = y.reshape(tb, ho, wo, 2, cout)
        y = jnp.max(y, axis=3)
        xf = y.reshape(tb * ho * wo, cout)
    else:
        ho, wo = H, W
        xf = y                                                  # (rows, cout)

    # ---- fused InattentionDropout (training only), applied AFTER the pool,
    # exactly like the reference: inattention(pool(relu(conv(x)))).
    if num_stacks > 0:
        # All attention stacks in one wide (cout, S*cout) 1x1 matmul.
        att = jnp.dot(xf.astype(jnp.bfloat16), aw_ref[...],
                      preferred_element_type=jnp.float32) + ab_ref[...]
        att = jax.nn.sigmoid(att)                               # (prow, S*cout)
        # Bernoulli(keep_p), keep_p = att*(1-p) + p, via an integer threshold
        # compare against the 23-bit hash (review item 9).  The column iota
        # differs per stack, so one hash evaluation gives decorrelated streams
        # for the three stacks.
        thresh = (att * jnp.float32((1.0 - dropout_p) * _TWO23)
                  + jnp.float32(dropout_p * _TWO23)).astype(jnp.int32)
        bits = _hash_bits23(att.shape,
                            _salt(seed_ref[0], layer_salt, pl.program_id(0)))
        # alpha_k*mask + (1-alpha_k)  ==  where(mask, 1, 1-alpha_k)
        factor = jnp.where(bits < thresh, jnp.float32(1.0),
                           jnp.float32(1.0) - alpha_ref[...])   # (prow, S*cout)
        combined = factor[:, 0:cout]
        for k in range(1, num_stacks):
            combined = combined * factor[:, k * cout:(k + 1) * cout]
        # Single global /(1-p) on the combined-mask product: exactly the
        # reference `x * combined_mask / (1 - dropout_prob)`.
        xf = xf * combined * jnp.float32(1.0 / (1.0 - dropout_p))

    # TODO(synk): review item 3 (lane-dense (B,Ho,Wo*Cout) output) needs a
    # sublane->lane fold reshape inside the kernel; kept as NHWC since that
    # reshape's Mosaic lowering is not guaranteed (conv3 is already 128-lane).
    o_ref[...] = xf.reshape(tb, ho, wo, cout).astype(o_ref.dtype)


def conv3x3_stage(x, w_torch, b, *, pool, ia=None, dropout_p=0.25, seed=0,
                  layer_salt=1, patch_input=False):
    """One fused conv stage.

    x: (B,H,W,Cin) bf16 activations, or (B,H,W,9*Cin) pre-built patches when
       patch_input=True (used for conv1's lane-sparse Cin=3).
    w_torch: (Cout, Cin, 3, 3) PyTorch-layout weights.
    ia: optional (w_cat (Cout, S*Cout), b_cat (1, S*Cout), alpha_norm (S,)).
    Returns (B, Ho, Wo, Cout) bf16.
    """
    B, H, W = x.shape[0], x.shape[1], x.shape[2]
    Cout, Cin = int(w_torch.shape[0]), int(w_torch.shape[1])
    Ho, Wo = (H // 2, W // 2) if pool else (H, W)

    # Tap-major weight layout (t = dy*3 + dx) built in the wrapper so the
    # kernel never reshapes weights (review item 1 note).
    w9 = jnp.transpose(w_torch, (2, 3, 1, 0)).reshape(9, Cin, Cout)
    w9 = w9.astype(jnp.bfloat16)
    w_arg = w9.reshape(9 * Cin, Cout) if patch_input else w9
    b2 = b.reshape(1, Cout).astype(jnp.float32)

    TB = _pick_batch_tile(B)
    grid = (B // TB,)

    in_specs = [pl.BlockSpec((TB,) + tuple(x.shape[1:]),
                             lambda i, s: (i, 0, 0, 0))]
    if patch_input:
        in_specs.append(pl.BlockSpec(w_arg.shape, lambda i, s: (0, 0)))
    else:
        in_specs.append(pl.BlockSpec(w_arg.shape, lambda i, s: (0, 0, 0)))
    in_specs.append(pl.BlockSpec((1, Cout), lambda i, s: (0, 0)))
    args = [x.astype(jnp.bfloat16), w_arg, b2]

    num_stacks = 0
    if ia is not None:
        aw, ab, alpha_norm = ia
        num_stacks = int(alpha_norm.shape[-1])
        alpha_exp = jnp.repeat(alpha_norm.astype(jnp.float32), Cout)
        alpha_exp = alpha_exp.reshape(1, num_stacks * Cout)
        in_specs += [
            pl.BlockSpec((Cout, num_stacks * Cout), lambda i, s: (0, 0)),
            pl.BlockSpec((1, num_stacks * Cout), lambda i, s: (0, 0)),
            pl.BlockSpec((1, num_stacks * Cout), lambda i, s: (0, 0)),
        ]
        args += [aw.astype(jnp.bfloat16), ab.astype(jnp.float32), alpha_exp]

    scratch = [pltpu.VMEM((TB * H * W, Cout), jnp.float32)]        # conv accumulator
    if not patch_input:
        scratch.append(pltpu.VMEM((TB, H + 2, W + 16, Cin), jnp.bfloat16))  # halo buf

    kernel = functools.partial(
        _conv_stage_kernel, patch_input=patch_input, tb=TB, H=H, W=W,
        cin=Cin, cout=Cout, pool=pool, num_stacks=num_stacks,
        dropout_p=float(dropout_p), layer_salt=int(layer_salt))

    seed_arr = jnp.asarray([seed], dtype=jnp.int32)
    return pl.pallas_call(
        kernel,
        out_shape=jax.ShapeDtypeStruct((B, Ho, Wo, Cout), jnp.bfloat16),
        grid_spec=pltpu.PrefetchScalarGridSpec(
            num_scalar_prefetch=1,
            grid=grid,
            in_specs=in_specs,
            out_specs=pl.BlockSpec((TB, Ho, Wo, Cout), lambda i, s: (i, 0, 0, 0)),
            scratch_shapes=scratch,
        ),
        compiler_params=_compiler_params(("parallel",)),
    )(seed_arr, *args)


# ----------------------------------------------------------------------------
# Fused MLP head: fc1 + bias + ReLU + Dropout + fc2 + bias in one kernel.
# fc2's 10 columns are zero-padded to 128 lanes in the wrapper (review item 11)
# and sliced back outside; no intermediate fc1 activation ever hits HBM.
# ----------------------------------------------------------------------------
def _mlp_head_kernel(seed_ref, x_ref, w1_ref, b1_ref, w2_ref, b2_ref, o_ref, *,
                     dropout_p, layer_salt):
    h = jnp.dot(x_ref[...], w1_ref[...], preferred_element_type=jnp.float32)
    h = jnp.maximum(h + b1_ref[...], 0.0)
    if dropout_p > 0.0:
        bits = _hash_bits23(h.shape,
                            _salt(seed_ref[0], layer_salt, pl.program_id(0)))
        thresh = jnp.int32(int(round((1.0 - dropout_p) * _TWO23)))
        h = jnp.where(bits < thresh,
                      h * jnp.float32(1.0 / (1.0 - dropout_p)),
                      jnp.float32(0.0))
    logits = jnp.dot(h.astype(jnp.bfloat16), w2_ref[...],
                     preferred_element_type=jnp.float32) + b2_ref[...]
    o_ref[...] = logits.astype(o_ref.dtype)


def mlp_head(x, w1, b1, w2, b2, *, dropout_p=0.0, seed=0, layer_salt=1):
    """x: (M, K); w1: (K, N1); w2: (N1, N2).  Returns (M, N2) f32 logits."""
    M, K = x.shape
    N1, N2 = int(w1.shape[1]), int(w2.shape[1])
    N2p = max(128, ((N2 + 127) // 128) * 128)
    Mp = max(8, ((M + 7) // 8) * 8)            # sublane-aligned row count
    if Mp != M:
        x = jnp.pad(x, ((0, Mp - M), (0, 0)))
    w2p = jnp.pad(w2, ((0, 0), (0, N2p - N2)))
    b2p = jnp.pad(b2, (0, N2p - N2))

    TM = _pick_row_tile(Mp)
    grid = (Mp // TM,)

    kernel = functools.partial(_mlp_head_kernel, dropout_p=float(dropout_p),
                               layer_salt=int(layer_salt))
    seed_arr = jnp.asarray([seed], dtype=jnp.int32)
    out = pl.pallas_call(
        kernel,
        out_shape=jax.ShapeDtypeStruct((Mp, N2p), jnp.float32),
        grid_spec=pltpu.PrefetchScalarGridSpec(
            num_scalar_prefetch=1,
            grid=grid,
            in_specs=[
                pl.BlockSpec((TM, K), lambda i, s: (i, 0)),
                pl.BlockSpec((K, N1), lambda i, s: (0, 0)),
                pl.BlockSpec((1, N1), lambda i, s: (0, 0)),
                pl.BlockSpec((N1, N2p), lambda i, s: (0, 0)),
                pl.BlockSpec((1, N2p), lambda i, s: (0, 0)),
            ],
            out_specs=pl.BlockSpec((TM, N2p), lambda i, s: (i, 0)),
        ),
        compiler_params=_compiler_params(("parallel",)),
    )(seed_arr, x.astype(jnp.bfloat16), w1.astype(jnp.bfloat16),
      b1.reshape(1, N1).astype(jnp.float32), w2p.astype(jnp.bfloat16),
      b2p.reshape(1, N2p).astype(jnp.float32))
    return out[:M, :N2]


# ----------------------------------------------------------------------------
# Parameter init (PyTorch default Conv2d/Linear init shapes) + forward pass
# ----------------------------------------------------------------------------
def init_params(key):
    def conv_init(k, cout, cin, kh, kw):
        fan_in = cin * kh * kw
        bound = 1.0 / float(fan_in) ** 0.5
        k1, k2 = jax.random.split(k)
        w = jax.random.uniform(k1, (cout, cin, kh, kw), jnp.float32, -bound, bound)
        b = jax.random.uniform(k2, (cout,), jnp.float32, -bound, bound)
        return w, b

    def linear_init(k, fin, fout):
        bound = 1.0 / float(fin) ** 0.5
        k1, k2 = jax.random.split(k)
        w = jax.random.uniform(k1, (fout, fin), jnp.float32, -bound, bound)
        b = jax.random.uniform(k2, (fout,), jnp.float32, -bound, bound)
        return w, b

    def ia_init(keyset, channels):
        ws, bs = [], []
        for kk in keyset:
            w, b = conv_init(kk, channels, channels, 1, 1)
            ws.append(jnp.transpose(w[:, :, 0, 0]))          # (Cin, Cout)
            bs.append(b)
        # Concatenated 1x1 weights: one wide matmul covers all 3 stacks.
        return jnp.concatenate(ws, axis=1), jnp.concatenate(bs).reshape(1, -1)

    keys = jax.random.split(key, 11)
    params = {}
    params["conv1"] = conv_init(keys[0], 32, 3, 3, 3)
    params["conv2"] = conv_init(keys[1], 64, 32, 3, 3)
    params["conv3"] = conv_init(keys[2], 128, 64, 3, 3)
    params["ia1_w"], params["ia1_b"] = ia_init(keys[3:6], 64)
    params["ia1_alpha"] = jnp.ones((3,), jnp.float32) / 3.0
    params["ia2_w"], params["ia2_b"] = ia_init(keys[6:9], 128)
    params["ia2_alpha"] = jnp.ones((3,), jnp.float32) / 3.0
    params["fc1"] = linear_init(keys[9], 128 * 8 * 8, 512)
    params["fc2"] = linear_init(keys[10], 512, 10)
    return params


def _im2col_patches_3x3(x_nhwc):
    """Wrapper-side 3x3 patch build (padding=1): (B,H,W,C) -> (B,H,W,9*C).

    Only used for conv1 (Cin=3): pre-building the 27-feature patch avoids the
    extreme lane-padding a Cin=3 in-kernel halo scratch would cost and lets
    the conv1 kernel run a single K=27 matmul (review items 1/8).
    """
    B, H, W, C = x_nhwc.shape
    xp = jnp.pad(x_nhwc, ((0, 0), (1, 1), (1, 1), (0, 0)))
    taps = [xp[:, dy:dy + H, dx:dx + W, :] for dy in range(3) for dx in range(3)]
    return jnp.concatenate(taps, axis=-1)


def inattention_cnn_forward(params, x_nchw, *, training=True, seed=0):
    """x_nchw: (B, 3, 32, 32) like the PyTorch module; returns (B, 10) f32 logits."""
    B = x_nchw.shape[0]
    x = jnp.transpose(x_nchw, (0, 2, 3, 1)).astype(jnp.bfloat16)   # -> NHWC bf16

    # x = relu(conv1(x))
    w1, b1 = params["conv1"]
    x = conv3x3_stage(_im2col_patches_3x3(x), w1, b1, pool=False, ia=None,
                      seed=seed, layer_salt=0x1B873593,
                      patch_input=True)                            # (B, 32, 32, 32)

    # x = inattention1(pool(relu(conv2(x))))   -- inattention AFTER pool (ref).
    ia1 = None
    if training:
        ia1 = (params["ia1_w"], params["ia1_b"], jax.nn.softmax(params["ia1_alpha"]))
    w2, b2 = params["conv2"]
    x = conv3x3_stage(x, w2, b2, pool=True, ia=ia1, dropout_p=0.25,
                      seed=seed, layer_salt=0x2545F491)            # (B, 16, 16, 64)

    # x = inattention2(pool(relu(conv3(x))))
    ia2 = None
    if training:
        ia2 = (params["ia2_w"], params["ia2_b"], jax.nn.softmax(params["ia2_alpha"]))
    w3, b3 = params["conv3"]
    x = conv3x3_stage(x, w3, b3, pool=True, ia=ia2, dropout_p=0.25,
                      seed=seed, layer_salt=0x68E31DA4)            # (B, 8, 8, 128)

    # PyTorch flattens NCHW: view(B, 128*8*8) in (C, H, W) order.
    x = jnp.transpose(x, (0, 3, 1, 2)).reshape(B, 128 * 8 * 8)

    # fc1 + ReLU + Dropout(0.25) + fc2, fused into one kernel (f32 logits).
    wf1, bf1 = params["fc1"]
    wf2, bf2 = params["fc2"]
    return mlp_head(x, jnp.transpose(wf1), bf1, jnp.transpose(wf2), bf2,
                    dropout_p=0.25 if training else 0.0,
                    seed=seed, layer_salt=0x7FEB352D)


if __name__ == "__main__":
    k_in, k_par = jax.random.split(jax.random.PRNGKey(0))
    x = jax.random.normal(k_in, (2, 3, 32, 32), jnp.float32)   # NCHW, like PyTorch
    params = init_params(k_par)

    # Default nn.Module state is training=True, so the Inattention / Dropout
    # paths are exercised (Bernoulli masks come from the in-kernel hash).
    out = inattention_cnn_forward(params, x, training=True, seed=0)
    out = jax.block_until_ready(out)

    assert out.shape == (2, 10), out.shape
    assert bool(jnp.all(jnp.isfinite(out)))
    print("KERNEL_OK")
</pallas_src>

<mosaic_0001>
module attributes {stable_mosaic.version = 11 : i64} {
  func.func @_conv_stage_kernel(%arg0: i32, %arg1: memref<1xi32, #tpu.memory_space<smem>>, %arg2: memref<1x32x32x27xbf16, #tpu.memory_space<vmem>>, %arg3: memref<27x32xbf16, #tpu.memory_space<vmem>>, %arg4: memref<1x32xf32, #tpu.memory_space<vmem>>, %arg5: memref<1x32x32x32xbf16, #tpu.memory_space<vmem>>, %arg6: memref<1024x32xf32, #tpu.memory_space<vmem>>) attributes {dimension_semantics = [#tpu.dimension_semantics<parallel>], iteration_bounds = array<i64: 2>, scalar_prefetch = 1 : i64, scratch_operands = 1 : i64, tpu.core_type = #tpu.core_type<tc>, window_params = [{transform_indices = @transform_0, window_bounds = array<i64: 1, 32, 32, 27>}, {pipeline_mode = #tpu.pipeline_mode<synchronous>, transform_indices = @transform_1, window_bounds = array<i64: 27, 32>}, {pipeline_mode = #tpu.pipeline_mode<synchronous>, transform_indices = @transform_2, window_bounds = array<i64: 1, 32>}, {transform_indices = @transform_3, window_bounds = array<i64: 1, 32, 32, 32>}]} {
    %c0 = arith.constant 0 : index
    %c0_0 = arith.constant 0 : index
    %c0_1 = arith.constant 0 : index
    %c0_2 = arith.constant 0 : index
    %0 = vector.load %arg2[%c0, %c0_0, %c0_1, %c0_2] : memref<1x32x32x27xbf16, #tpu.memory_space<vmem>>, vector<1x32x32x27xbf16>
    %1 = vector.shape_cast %0 : vector<1x32x32x27xbf16> to vector<1024x27xbf16>
    %c0_3 = arith.constant 0 : index
    %c0_4 = arith.constant 0 : index
    %2 = vector.load %arg3[%c0_3, %c0_4] : memref<27x32xbf16, #tpu.memory_space<vmem>>, vector<27x32xbf16>
    %cst = arith.constant dense<0.000000e+00> : vector<1024x32xf32>
    %3 = tpu.matmul %1, %2, %cst {dimension_numbers = #tpu.dot_dimension_numbers<[1], [0], [0], [1], [0, 0, 1, 1], [], []>} : vector<1024x27xbf16>, vector<27x32xbf16>, vector<1024x32xf32> -> vector<1024x32xf32>
    %c0_5 = arith.constant 0 : index
    %c0_6 = arith.constant 0 : index
    %4 = vector.load %arg6[%c0_5, %c0_6] : memref<1024x32xf32, #tpu.memory_space<vmem>>, vector<1024x32xf32>
    tpu.vector_store %arg6[%c0_5, %c0_6], %3 {strides = array<i32>} : memref<1024x32xf32, #tpu.memory_space<vmem>>, vector<1024x32xf32>,
    %c0_7 = arith.constant 0 : index
    %c0_8 = arith.constant 0 : index
    %5 = vector.load %arg6[%c0_7, %c0_8] : memref<1024x32xf32, #tpu.memory_space<vmem>>, vector<1024x32xf32>
    %c0_9 = arith.constant 0 : index
    %c0_10 = arith.constant 0 : index
    %6 = vector.load %arg4[%c0_9, %c0_10] : memref<1x32xf32, #tpu.memory_space<vmem>>, vector<1x32xf32>
    %7 = vector.broadcast %6 : vector<1x32xf32> to vector<1024x32xf32>
    %8 = arith.addf %5, %7 : vector<1024x32xf32>
    %cst_11 = arith.constant 0.000000e+00 : f32
    %9 = vector.broadcast %cst_11 : f32 to vector<1024x32xf32>
    %10 = arith.maximumf %8, %9 : vector<1024x32xf32>
    %11 = vector.shape_cast %10 : vector<1024x32xf32> to vector<1x32x32x32xf32>
    %12 = arith.truncf %11 : vector<1x32x32x32xf32> to vector<1x32x32x32xbf16>
    %c0_12 = arith.constant 0 : index
    %c0_13 = arith.constant 0 : index
    %c0_14 = arith.constant 0 : index
    %c0_15 = arith.constant 0 : index
    %13 = vector.load %arg5[%c0_12, %c0_13, %c0_14, %c0_15] : memref<1x32x32x32xbf16, #tpu.memory_space<vmem>>, vector<1x32x32x32xbf16>
    tpu.vector_store %arg5[%c0_12, %c0_13, %c0_14, %c0_15], %12 {strides = array<i32>} : memref<1x32x32x32xbf16, #tpu.memory_space<vmem>>, vector<1x32x32x32xbf16>,
    return
  }
  func.func @transform_0(%arg0: i32, %arg1: memref<1xi32, #tpu.memory_space<smem>>) -> (i32, i32, i32, i32) {
    %c0_i32 = arith.constant 0 : i32
    %c0_i32_0 = arith.constant 0 : i32
    %c0_i32_1 = arith.constant 0 : i32
    %c0_i32_2 = arith.constant 0 : i32
    return %arg0, %c0_i32, %c0_i32_0, %c0_i32_1 : i32, i32, i32, i32
  }
  func.func @transform_1(%arg0: i32, %arg1: memref<1xi32, #tpu.memory_space<smem>>) -> (i32, i32) {
    %c0_i32 = arith.constant 0 : i32
    %c0_i32_0 = arith.constant 0 : i32
    %c0_i32_1 = arith.constant 0 : i32
    return %c0_i32, %c0_i32_0 : i32, i32
  }
  func.func @transform_2(%arg0: i32, %arg1: memref<1xi32, #tpu.memory_space<smem>>) -> (i32, i32) {
    %c0_i32 = arith.constant 0 : i32
    %c0_i32_0 = arith.constant 0 : i32
    %c0_i32_1 = arith.constant 0 : i32
    return %c0_i32, %c0_i32_0 : i32, i32
  }
  func.func @transform_3(%arg0: i32, %arg1: memref<1xi32, #tpu.memory_space<smem>>) -> (i32, i32, i32, i32) {
    %c0_i32 = arith.constant 0 : i32
    %c0_i32_0 = arith.constant 0 : i32
    %c0_i32_1 = arith.constant 0 : i32
    %c0_i32_2 = arith.constant 0 : i32
    return %arg0, %c0_i32, %c0_i32_0, %c0_i32_1 : i32, i32, i32, i32
  }
}

</mosaic_0001>

<llo_original>
// kernel: tpu_custom_call.1
$region0: #{tpu_custom_call.1}
  #allocation0 [shape = 'u32[]', space=smem, size = 0x4, offset = 0x4, fixed_abs, tag = 'smem constant byte address 0x4 - core index']
  #allocation1 [shape = 'u32[144,128]{1,0:T(1,128)}', space=vmem, size = 0x12000, scoped, tag = 'internal scratch']
  #allocation2 [shape = 'f32[1024,32]{1,0:T(8,128)}', space=vmem, size = 0x80000, scoped, tag = 'scratch operand']
  #allocation3 [shape = 's32[1]{0}', space=sflag, size = 0x4, scoped, tag = 'scoped memory for tpu_custom_call.1']
  #allocation4 [shape = 's32[1]{0:T(128)S(6)}', space=smem, size = 0x200, scoped, tag = 'prefetched SMEM operand 0']
  %s0 = inlined_call_operand.<no memory space> [shape: s32[1], index: 0, kind: input, shape index: {}]
  %s1 = inlined_call_operand.vmem [shape: bf16[2,32,32,27], index: 1, kind: input, shape index: {}]
  %s2 = inlined_call_operand.vmem [shape: bf16[27,32], index: 2, kind: input, shape index: {}]
  %s3 = inlined_call_operand.vmem [shape: f32[1,32], index: 3, kind: input, shape index: {}]
  %s4 = inlined_call_operand.hbm [shape: bf16[2,32,32,32], index: 4, kind: output, shape index: {}]
  %s5 = sld [smem:[#allocation0]]
  $region45: #{tpu_custom_call.1} parent=0
    _
  %s7 = ssub.s32 1, %s5
  %s8 = scalar_select 0, %s7, %s5
  %9 = sst [smem:[#allocation4]] %s0
  $region1: #{tpu_custom_call.1} parent=0
    #allocation5 [shape = 'u8[524288]{0}', space=vmem, size = 0x80000, scoped, tag = 'output window, operand 0']
    #allocation6 [shape = 's32[2]{0}', space=sflag, size = 0x8, scoped, tag = 'scoped memory for tpu_custom_call.1']
    %10 = vsyncpa [#allocation6], 0
    %s11 = scalar_lea.sflag [#allocation6], 1
    %12 = vsyncpa %s11, 0
    loop: start=0, step=1, limit=4
    $region2: #{tpu_custom_call.1} parent=1 // loop_pre_header
      _
    $region3: #{tpu_custom_call.1} parent=1 // loop_header
      %s14 = sphi 0, %s18
      %p15 = scmp.ge.s32.totalorder %s14, 4
      %s24 = sphi 0, %s26
      %s27 = sphi 0, %s24
      %s28 = sphi 0, %s27
      %s44 = sphi 0, %s28
      %s48 = sphi 0, %s48
      %s50 = sphi 0, %s48
      %s51 = sphi 0, %s50
      %s65 = sphi 0, %s51
      %s69 = sphi 0, %s69
      %s71 = sphi 0, %s69
      %s72 = sphi 0, %s71
      %s86 = sphi 0, %s72
      %s92 = sphi 0, %s94
      %s95 = sphi 0, %s92
      %s96 = sphi 0, %s95
      %s112 = sphi 0, %s96
    $region4: #{tpu_custom_call.1} parent=1 // loop_header_branch
      %17 = sbr.rel (%p15) target = $region8
    $region5: #{tpu_custom_call.1} parent=1 // loop_body
      %s19 = ssub.s32 %s14, 1
      %s20 = ssub.s32 %s14, 2
      %s21 = sadd.s32 %s14, 1
      %s22 = ssub.s32 %s14, %s21
      %p23 = scmp.eq.s32.totalorder %s22, 0
      %s25 = sadd.s32 %s24, 1
      %s26 = scalar_select %p23, %s24, %s25
      %p29 = pneg %p23
      %p30 = scmp.eq.s32.totalorder %s14, 1
      %p31 = por %p29, %p30
      %p32 = scmp.ne.s32.totalorder %s24, %s27
      %p33 = scmp.eq.s32.totalorder %s14, 0
      %p34 = por %p32, %p33
      %p35 = scmp.ne.s32.totalorder %s24, %s27
      %p36 = scmp.eq.s32.totalorder %s19, 1
      %p37 = por %p35, %p36
      %p38 = scmp.ne.s32.totalorder %s27, %s28
      %p39 = scmp.eq.s32.totalorder %s19, 0
      %p40 = por %p38, %p39
      %p41 = scmp.ne.s32.totalorder %s27, %s28
      %p42 = scmp.eq.s32.totalorder %s20, 1
      %p43 = por %p41, %p42
      %p45 = scmp.ne.s32.totalorder %s28, %s44
      %p46 = scmp.eq.s32.totalorder %s20, 0
      %p47 = por %p45, %p46
      %s49 = sadd.s32 %s48, 1
      %p52 = scmp.eq.s32.totalorder %s14, 1
      %p53 = scmp.ne.s32.totalorder %s48, %s50
      %p54 = scmp.eq.s32.totalorder %s14, 0
      %p55 = por %p53, %p54
      %p56 = scmp.ne.s32.totalorder %s48, %s50
      %p57 = scmp.eq.s32.totalorder %s19, 1
      %p58 = por %p56, %p57
      %p59 = scmp.ne.s32.totalorder %s50, %s51
      %p60 = scmp.eq.s32.totalorder %s19, 0
      %p61 = por %p59, %p60
      %p62 = scmp.ne.s32.totalorder %s50, %s51
      %p63 = scmp.eq.s32.totalorder %s20, 1
      %p64 = por %p62, %p63
      %p66 = scmp.ne.s32.totalorder %s51, %s65
      %p67 = scmp.eq.s32.totalorder %s20, 0
      %p68 = por %p66, %p67
      %s70 = sadd.s32 %s69, 1
      %p73 = scmp.eq.s32.totalorder %s14, 1
      %p74 = scmp.ne.s32.totalorder %s69, %s71
      %p75 = scmp.eq.s32.totalorder %s14, 0
      %p76 = por %p74, %p75
      %p77 = scmp.ne.s32.totalorder %s69, %s71
      %p78 = scmp.eq.s32.totalorder %s19, 1
      %p79 = por %p77, %p78
      %p80 = scmp.ne.s32.totalorder %s71, %s72
      %p81 = scmp.eq.s32.totalorder %s19, 0
      %p82 = por %p80, %p81
      %p83 = scmp.ne.s32.totalorder %s71, %s72
      %p84 = scmp.eq.s32.totalorder %s20, 1
      %p85 = por %p83, %p84
      %p87 = scmp.ne.s32.totalorder %s72, %s86
      %p88 = scmp.eq.s32.totalorder %s20, 0
      %p89 = por %p87, %p88
      %s90 = ssub.s32 %s14, %s21
      %p91 = scmp.eq.s32.totalorder %s90, 0
      %s93 = sadd.s32 %s92, 1
      %s94 = scalar_select %p91, %s92, %s93
      %p97 = pneg %p91
      %p98 = scmp.eq.s32.totalorder %s14, 1
      %p99 = por %p97, %p98
      %p100 = scmp.ne.s32.totalorder %s92, %s95
      %p101 = scmp.eq.s32.totalorder %s14, 0
      %p102 = por %p100, %p101
      %p103 = scmp.ne.s32.totalorder %s92, %s95
      %p104 = scmp.eq.s32.totalorder %s19, 1
      %p105 = por %p103, %p104
      %p106 = scmp.ne.s32.totalorder %s95, %s96
      %p107 = scmp.eq.s32.totalorder %s19, 0
      %p108 = por %p106, %p107
      %p109 = scmp.ne.s32.totalorder %s95, %s96
      %p110 = scmp.eq.s32.totalorder %s20, 1
      %p111 = por %p109, %p110
      %p113 = scmp.ne.s32.totalorder %s96, %s112
      %p114 = scmp.eq.s32.totalorder %s20, 0
      %p115 = por %p113, %p114
      %p116 = scmp.le.s32.totalorder 1, %s14
      %p117 = scmp.lt.s32.totalorder %s14, 3
      %p118 = pnand %p116, %p117
      %p119 = pneg %p118
      // Predicated region
      $region9: #{tpu_custom_call.1} parent=5 // pred_check
        _
      $region10: #{tpu_custom_call.1} parent=5 // pred_check_branch
        %121 = sbr.rel (%p118) target = $region12
      $region11: #{tpu_custom_call.1} parent=5 // pred_region
        %s122 = ssub.s32 %s14, 1
        // Predicated region
        $region13: #{tpu_custom_call.1} parent=11 // pred_check
          %p123 = pneg %p61
        $region14: #{tpu_custom_call.1} parent=11 // pred_check_branch
          %125 = sbr.rel (%p123) target = $region16
        $region15: #{tpu_custom_call.1} parent=11 // pred_region
          _
        $region16: #{tpu_custom_call.1} parent=11 // pred_fallthru
          _
        // Predicated region
        $region17: #{tpu_custom_call.1} parent=11 // pred_check
          %p126 = pneg %p82
        $region18: #{tpu_custom_call.1} parent=11 // pred_check_branch
          %128 = sbr.rel (%p126) target = $region20
        $region19: #{tpu_custom_call.1} parent=11 // pred_region
          _
        $region20: #{tpu_custom_call.1} parent=11 // pred_fallthru
          _
      $region12: #{tpu_custom_call.1} parent=5 // pred_fallthru
        _
      %p129 = scmp.lt.s32.totalorder %s14, 2
      // Predicated region
      $region21: #{tpu_custom_call.1} parent=5 // pred_check
        %p130 = pneg %p129
      $region22: #{tpu_custom_call.1} parent=5 // pred_check_branch
        %132 = sbr.rel (%p130) target = $region24
      $region23: #{tpu_custom_call.1} parent=5 // pred_region
        // Predicated region
        $region25: #{tpu_custom_call.1} parent=23 // pred_check
          %p133 = pneg %p34
        $region26: #{tpu_custom_call.1} parent=23 // pred_check_branch
          %135 = sbr.rel (%p133) target = $region28
        $region27: #{tpu_custom_call.1} parent=23 // pred_region
          %p136 = scmp.lt.s32.totalorder %s14, 1
          %s137 = scalar_select %p136, %s14, 1
          %s138 = smul.addr %s137, 128
          %s139 = smul.addr %s138, 4
          %s140 = scalar_lea.vmem %s1, %s139
        $region28: #{tpu_custom_call.1} parent=23 // pred_fallthru
          _
      $region24: #{tpu_custom_call.1} parent=5 // pred_fallthru
        _
      %p141 = scmp.le.s32.totalorder 1, %s14
      %p142 = scmp.lt.s32.totalorder %s14, 3
      %p143 = pnand %p141, %p142
      %p144 = pneg %p143
      // Predicated region
      $region29: #{tpu_custom_call.1} parent=5 // pred_check
        _
      $region30: #{tpu_custom_call.1} parent=5 // pred_check_branch
        %146 = sbr.rel (%p143) target = $region32
      $region31: #{tpu_custom_call.1} parent=5 // pred_region
        %s147 = ssub.s32 %s14, 1
        %p148 = scmp.lt.s32.totalorder %s19, 1
        %s149 = scalar_select %p148, %s19, 1
        %s150 = smul.addr %s149, 128
        %s151 = smul.addr %s150, 4
        %s152 = scalar_lea.vmem %s1, %s151
        %p153 = pneg %p40
        %p154 = pneg %p37
        %p155 = pneg %p61
        %p156 = pneg %p58
        %p157 = pneg %p82
        %p158 = pneg %p79
        %p159 = pneg %p108
        %p160 = pneg %p105
        %s161 = sand.u32 %s95, 1
        %s162 = scalar_lea.sflag [#allocation6], %s161
        %s163 = sand.u32 %s95, 1
        %s164 = smul.addr %s163, 512
        %s165 = scalar_lea.vmem [#allocation5], %s164
        %p166 = scmp.lt.s32.totalorder %s19, 1
        %s167 = scalar_select %p166, %s19, 1
        %s168 = smul.addr %s167, 128
        %s169 = smul.addr %s168, 4
        %s170 = scalar_lea.vmem %s1, %s169
        %v172 = vld [vmem:[%s170] sm:$0xf]
        %v173 = vld [vmem:[%s170 + $0x4] sm:$0xf]
        %v174 = vld [vmem:[%s170 + $0x8] sm:$0xf]
        %v175 = vld [vmem:[%s170 + $0xc] sm:$0xf]
        %v176 = vld [vmem:[%s170 + $0x10] sm:$0xf]
        %v177 = vld [vmem:[%s170 + $0x14] sm:$0xf]
        %v178 = vld [vmem:[%s170 + $0x18] sm:$0xf]
        %v179 = vld [vmem:[%s170 + $0x1c] sm:$0xf]
        %v180 = vld [vmem:[%s170 + $0x20] sm:$0xf]
        %v181 = vld [vmem:[%s170 + $0x24] sm:$0xf]
        %v182 = vld [vmem:[%s170 + $0x28] sm:$0xf]
        %v183 = vld [vmem:[%s170 + $0x2c] sm:$0xf]
        %v184 = vld [vmem:[%s170 + $0x30] sm:$0xf]
        %v185 = vld [vmem:[%s170 + $0x34] sm:$0xf]
        %v186 = vld [vmem:[%s170 + $0x38] sm:$0xf]
        %v187 = vld [vmem:[%s170 + $0x3c] sm:$0xf]
        %v188 = vld [vmem:[%s170 + $0x40] sm:$0xf]
        %v189 = vld [vmem:[%s170 + $0x44] sm:$0xf]
        %v190 = vld [vmem:[%s170 + $0x48] sm:$0xf]
        %v191 = vld [vmem:[%s170 + $0x4c] sm:$0xf]
        %v192 = vld [vmem:[%s170 + $0x50] sm:$0xf]
        %v193 = vld [vmem:[%s170 + $0x54] sm:$0xf]
        %v194 = vld [vmem:[%s170 + $0x58] sm:$0xf]
        %v195 = vld [vmem:[%s170 + $0x5c] sm:$0xf]
        %v196 = vld [vmem:[%s170 + $0x60] sm:$0xf]
        %v197 = vld [vmem:[%s170 + $0x64] sm:$0xf]
        %v198 = vld [vmem:[%s170 + $0x68] sm:$0xf]
        %v199 = vld [vmem:[%s170 + $0x6c] sm:$0xf]
        %v200 = vld [vmem:[%s170 + $0x70] sm:$0xf]
        %v201 = vld [vmem:[%s170 + $0x74] sm:$0xf]
        %v202 = vld [vmem:[%s170 + $0x78] sm:$0xf]
        %v203 = vld [vmem:[%s170 + $0x7c] sm:$0xf]
        %v204 = vld [vmem:[%s170 + $0x80] sm:$0xf]
        %v205 = vld [vmem:[%s170 + $0x84] sm:$0xf]
        %v206 = vld [vmem:[%s170 + $0x88] sm:$0xf]
        %v207 = vld [vmem:[%s170 + $0x8c] sm:$0xf]
        %v208 = vld [vmem:[%s170 + $0x90] sm:$0xf]
        %v209 = vld [vmem:[%s170 + $0x94] sm:$0xf]
        %v210 = vld [vmem:[%s170 + $0x98] sm:$0xf]
        %v211 = vld [vmem:[%s170 + $0x9c] sm:$0xf]
        %v212 = vld [vmem:[%s170 + $0xa0] sm:$0xf]
        %v213 = vld [vmem:[%s170 + $0xa4] sm:$0xf]
        %v214 = vld [vmem:[%s170 + $0xa8] sm:$0xf]
        %v215 = vld [vmem:[%s170 + $0xac] sm:$0xf]
        %v216 = vld [vmem:[%s170 + $0xb0] sm:$0xf]
        %v217 = vld [vmem:[%s170 + $0xb4] sm:$0xf]
        %v218 = vld [vmem:[%s170 + $0xb8] sm:$0xf]
        %v219 = vld [vmem:[%s170 + $0xbc] sm:$0xf]
        %v220 = vld [vmem:[%s170 + $0xc0] sm:$0xf]
        %v221 = vld [vmem:[%s170 + $0xc4] sm:$0xf]
        %v222 = vld [vmem:[%s170 + $0xc8] sm:$0xf]
        %v223 = vld [vmem:[%s170 + $0xcc] sm:$0xf]
        %v224 = vld [vmem:[%s170 + $0xd0] sm:$0xf]
        %v225 = vld [vmem:[%s170 + $0xd4] sm:$0xf]
        %v226 = vld [vmem:[%s170 + $0xd8] sm:$0xf]
        %v227 = vld [vmem:[%s170 + $0xdc] sm:$0xf]
        %v228 = vld [vmem:[%s170 + $0xe0] sm:$0xf]
        %v229 = vld [vmem:[%s170 + $0xe4] sm:$0xf]
        %v230 = vld [vmem:[%s170 + $0xe8] sm:$0xf]
        %v231 = vld [vmem:[%s170 + $0xec] sm:$0xf]
        %v232 = vld [vmem:[%s170 + $0xf0] sm:$0xf]
        %v233 = vld [vmem:[%s170 + $0xf4] sm:$0xf]
        %v234 = vld [vmem:[%s170 + $0xf8] sm:$0xf]
        %v235 = vld [vmem:[%s170 + $0xfc] sm:$0xf]
        %v236 = vld [vmem:[%s170 + $0x100] sm:$0xf]
        %v237 = vld [vmem:[%s170 + $0x104] sm:$0xf]
        %v238 = vld [vmem:[%s170 + $0x108] sm:$0xf]
        %v239 = vld [vmem:[%s170 + $0x10c] sm:$0xf]
        %v240 = vld [vmem:[%s170 + $0x110] sm:$0xf]
        %v241 = vld [vmem:[%s170 + $0x114] sm:$0xf]
        %v242 = vld [vmem:[%s170 + $0x118] sm:$0xf]
        %v243 = vld [vmem:[%s170 + $0x11c] sm:$0xf]
        %v244 = vld [vmem:[%s170 + $0x120] sm:$0xf]
        %v245 = vld [vmem:[%s170 + $0x124] sm:$0xf]
        %v246 = vld [vmem:[%s170 + $0x128] sm:$0xf]
        %v247 = vld [vmem:[%s170 + $0x12c] sm:$0xf]
        %v248 = vld [vmem:[%s170 + $0x130] sm:$0xf]
        %v249 = vld [vmem:[%s170 + $0x134] sm:$0xf]
        %v250 = vld [vmem:[%s170 + $0x138] sm:$0xf]
        %v251 = vld [vmem:[%s170 + $0x13c] sm:$0xf]
        %v252 = vld [vmem:[%s170 + $0x140] sm:$0xf]
        %v253 = vld [vmem:[%s170 + $0x144] sm:$0xf]
        %v254 = vld [vmem:[%s170 + $0x148] sm:$0xf]
        %v255 = vld [vmem:[%s170 + $0x14c] sm:$0xf]
        %v256 = vld [vmem:[%s170 + $0x150] sm:$0xf]
        %v257 = vld [vmem:[%s170 + $0x154] sm:$0xf]
        %v258 = vld [vmem:[%s170 + $0x158] sm:$0xf]
        %v259 = vld [vmem:[%s170 + $0x15c] sm:$0xf]
        %v260 = vld [vmem:[%s170 + $0x160] sm:$0xf]
        %v261 = vld [vmem:[%s170 + $0x164] sm:$0xf]
        %v262 = vld [vmem:[%s170 + $0x168] sm:$0xf]
        %v263 = vld [vmem:[%s170 + $0x16c] sm:$0xf]
        %v264 = vld [vmem:[%s170 + $0x170] sm:$0xf]
        %v265 = vld [vmem:[%s170 + $0x174] sm:$0xf]
        %v266 = vld [vmem:[%s170 + $0x178] sm:$0xf]
        %v267 = vld [vmem:[%s170 + $0x17c] sm:$0xf]
        %v268 = vld [vmem:[%s170 + $0x180] sm:$0xf]
        %v269 = vld [vmem:[%s170 + $0x184] sm:$0xf]
        %v270 = vld [vmem:[%s170 + $0x188] sm:$0xf]
        %v271 = vld [vmem:[%s170 + $0x18c] sm:$0xf]
        %v272 = vld [vmem:[%s170 + $0x190] sm:$0xf]
        %v273 = vld [vmem:[%s170 + $0x194] sm:$0xf]
        %v274 = vld [vmem:[%s170 + $0x198] sm:$0xf]
        %v275 = vld [vmem:[%s170 + $0x19c] sm:$0xf]
        %v276 = vld [vmem:[%s170 + $0x1a0] sm:$0xf]
        %v277 = vld [vmem:[%s170 + $0x1a4] sm:$0xf]
        %v278 = vld [vmem:[%s170 + $0x1a8] sm:$0xf]
        %v279 = vld [vmem:[%s170 + $0x1ac] sm:$0xf]
        %v280 = vld [vmem:[%s170 + $0x1b0] sm:$0xf]
        %v281 = vld [vmem:[%s170 + $0x1b4] sm:$0xf]
        %v282 = vld [vmem:[%s170 + $0x1b8] sm:$0xf]
        %v283 = vld [vmem:[%s170 + $0x1bc] sm:$0xf]
        %v284 = vld [vmem:[%s170 + $0x1c0] sm:$0xf]
        %v285 = vld [vmem:[%s170 + $0x1c4] sm:$0xf]
        %v286 = vld [vmem:[%s170 + $0x1c8] sm:$0xf]
        %v287 = vld [vmem:[%s170 + $0x1cc] sm:$0xf]
        %v288 = vld [vmem:[%s170 + $0x1d0] sm:$0xf]
        %v289 = vld [vmem:[%s170 + $0x1d4] sm:$0xf]
        %v290 = vld [vmem:[%s170 + $0x1d8] sm:$0xf]
        %v291 = vld [vmem:[%s170 + $0x1dc] sm:$0xf]
        %v292 = vld [vmem:[%s170 + $0x1e0] sm:$0xf]
        %v293 = vld [vmem:[%s170 + $0x1e4] sm:$0xf]
        %v294 = vld [vmem:[%s170 + $0x1e8] sm:$0xf]
        %v295 = vld [vmem:[%s170 + $0x1ec] sm:$0xf]
        %v296 = vld [vmem:[%s170 + $0x1f0] sm:$0xf]
        %v297 = vld [vmem:[%s170 + $0x1f4] sm:$0xf]
        %v298 = vld [vmem:[%s170 + $0x1f8] sm:$0xf]
        %v299 = vld [vmem:[%s170 + $0x1fc] sm:$0xf]
        %v300 = vld [vmem:[%s2] sm:$0xf]
        %v301 = vld [vmem:[%s2 + $0x4] sm:$0xf]
        %v302 = vld [vmem:[%s2 + $0x8] sm:$0xf]
        %v303 = vld [vmem:[%s2 + $0xc] sm:$0x3]
        %v432 = vunpack.c.l.b16 %v172
        %v433 = vunpack.c.l.b16 %v173
        %v434 = vunpack.c.l.b16 %v174
        %v435 = vunpack.c.l.b16 %v175
        %v436 = vunpack.c.l.b16 %v176
        %v437 = vunpack.c.l.b16 %v177
        %v438 = vunpack.c.l.b16 %v178
        %v439 = vunpack.c.l.b16 %v179
        %v440 = vunpack.c.l.b16 %v180
        %v441 = vunpack.c.l.b16 %v181
        %v442 = vunpack.c.l.b16 %v182
        %v443 = vunpack.c.l.b16 %v183
        %v444 = vunpack.c.l.b16 %v184
        %v445 = vunpack.c.l.b16 %v185
        %v446 = vunpack.c.l.b16 %v186
        %v447 = vunpack.c.l.b16 %v187
        %v448 = vunpack.c.l.b16 %v188
        %v449 = vunpack.c.l.b16 %v189
        %v450 = vunpack.c.l.b16 %v190
        %v451 = vunpack.c.l.b16 %v191
        %v452 = vunpack.c.l.b16 %v192
        %v453 = vunpack.c.l.b16 %v193
        %v454 = vunpack.c.l.b16 %v194
        %v455 = vunpack.c.l.b16 %v195
        %v456 = vunpack.c.l.b16 %v196
        %v457 = vunpack.c.l.b16 %v197
        %v458 = vunpack.c.l.b16 %v198
        %v459 = vunpack.c.l.b16 %v199
        %v460 = vunpack.c.l.b16 %v200
        %v461 = vunpack.c.l.b16 %v201
        %v462 = vunpack.c.l.b16 %v202
        %v463 = vunpack.c.l.b16 %v203
        %v464 = vunpack.c.l.b16 %v204
        %v465 = vunpack.c.l.b16 %v205
        %v466 = vunpack.c.l.b16 %v206
        %v467 = vunpack.c.l.b16 %v207
        %v468 = vunpack.c.l.b16 %v208
        %v469 = vunpack.c.l.b16 %v209
        %v470 = vunpack.c.l.b16 %v210
        %v471 = vunpack.c.l.b16 %v211
        %v472 = vunpack.c.l.b16 %v212
        %v473 = vunpack.c.l.b16 %v213
        %v474 = vunpack.c.l.b16 %v214
        %v475 = vunpack.c.l.b16 %v215
        %v476 = vunpack.c.l.b16 %v216
        %v477 = vunpack.c.l.b16 %v217
        %v478 = vunpack.c.l.b16 %v218
        %v479 = vunpack.c.l.b16 %v219
        %v480 = vunpack.c.l.b16 %v220
        %v481 = vunpack.c.l.b16 %v221
        %v482 = vunpack.c.l.b16 %v222
        %v483 = vunpack.c.l.b16 %v223
        %v484 = vunpack.c.l.b16 %v224
        %v485 = vunpack.c.l.b16 %v225
        %v486 = vunpack.c.l.b16 %v226
        %v487 = vunpack.c.l.b16 %v227
        %v488 = vunpack.c.l.b16 %v228
        %v489 = vunpack.c.l.b16 %v229
        %v490 = vunpack.c.l.b16 %v230
        %v491 = vunpack.c.l.b16 %v231
        %v492 = vunpack.c.l.b16 %v232
        %v493 = vunpack.c.l.b16 %v233
        %v494 = vunpack.c.l.b16 %v234
        %v495 = vunpack.c.l.b16 %v235
        %v496 = vunpack.c.l.b16 %v236
        %v497 = vunpack.c.l.b16 %v237
        %v498 = vunpack.c.l.b16 %v238
        %v499 = vunpack.c.l.b16 %v239
        %v500 = vunpack.c.l.b16 %v240
        %v501 = vunpack.c.l.b16 %v241
        %v502 = vunpack.c.l.b16 %v242
        %v503 = vunpack.c.l.b16 %v243
        %v504 = vunpack.c.l.b16 %v244
        %v505 = vunpack.c.l.b16 %v245
        %v506 = vunpack.c.l.b16 %v246
        %v507 = vunpack.c.l.b16 %v247
        %v508 = vunpack.c.l.b16 %v248
        %v509 = vunpack.c.l.b16 %v249
        %v510 = vunpack.c.l.b16 %v250
        %v511 = vunpack.c.l.b16 %v251
        %v512 = vunpack.c.l.b16 %v252
        %v513 = vunpack.c.l.b16 %v253
        %v514 = vunpack.c.l.b16 %v254
        %v515 = vunpack.c.l.b16 %v255
        %v516 = vunpack.c.l.b16 %v256
        %v517 = vunpack.c.l.b16 %v257
        %v518 = vunpack.c.l.b16 %v258
        %v519 = vunpack.c.l.b16 %v259
        %v520 = vunpack.c.l.b16 %v260
        %v521 = vunpack.c.l.b16 %v261
        %v522 = vunpack.c.l.b16 %v262
        %v523 = vunpack.c.l.b16 %v263
        %v524 = vunpack.c.l.b16 %v264
        %v525 = vunpack.c.l.b16 %v265
        %v526 = vunpack.c.l.b16 %v266
        %v527 = vunpack.c.l.b16 %v267
        %v528 = vunpack.c.l.b16 %v268
        %v529 = vunpack.c.l.b16 %v269
        %v530 = vunpack.c.l.b16 %v270
        %v531 = vunpack.c.l.b16 %v271
        %v532 = vunpack.c.l.b16 %v272
        %v533 = vunpack.c.l.b16 %v273
        %v534 = vunpack.c.l.b16 %v274
        %v535 = vunpack.c.l.b16 %v275
        %v536 = vunpack.c.l.b16 %v276
        %v537 = vunpack.c.l.b16 %v277
        %v538 = vunpack.c.l.b16 %v278
        %v539 = vunpack.c.l.b16 %v279
        %v540 = vunpack.c.l.b16 %v280
        %v541 = vunpack.c.l.b16 %v281
        %v542 = vunpack.c.l.b16 %v282
        %v543 = vunpack.c.l.b16 %v283
        %v544 = vunpack.c.l.b16 %v284
        %v545 = vunpack.c.l.b16 %v285
        %v546 = vunpack.c.l.b16 %v286
        %v547 = vunpack.c.l.b16 %v287
        %v548 = vunpack.c.l.b16 %v288
        %v549 = vunpack.c.l.b16 %v289
        %v550 = vunpack.c.l.b16 %v290
        %v551 = vunpack.c.l.b16 %v291
        %v552 = vunpack.c.l.b16 %v292
        %v553 = vunpack.c.l.b16 %v293
        %v554 = vunpack.c.l.b16 %v294
        %v555 = vunpack.c.l.b16 %v295
        %v556 = vunpack.c.l.b16 %v296
        %v557 = vunpack.c.l.b16 %v297
        %v558 = vunpack.c.l.b16 %v298
        %v559 = vunpack.c.l.b16 %v299
        %v560 = vpack.c.b16 %v433, %v432
        %v561 = vpack.c.b16 %v435, %v434
        %v562 = vpack.c.b16 %v437, %v436
        %v563 = vpack.c.b16 %v439, %v438
        %v564 = vpack.c.b16 %v441, %v440
        %v565 = vpack.c.b16 %v443, %v442
        %v566 = vpack.c.b16 %v445, %v444
        %v567 = vpack.c.b16 %v447, %v446
        %v568 = vpack.c.b16 %v449, %v448
        %v569 = vpack.c.b16 %v451, %v450
        %v570 = vpack.c.b16 %v453, %v452
        %v571 = vpack.c.b16 %v455, %v454
        %v572 = vpack.c.b16 %v457, %v456
        %v573 = vpack.c.b16 %v459, %v458
        %v574 = vpack.c.b16 %v461, %v460
        %v575 = vpack.c.b16 %v463, %v462
        %v576 = vpack.c.b16 %v465, %v464
        %v577 = vpack.c.b16 %v467, %v466
        %v578 = vpack.c.b16 %v469, %v468
        %v579 = vpack.c.b16 %v471, %v470
        %v580 = vpack.c.b16 %v473, %v472
        %v581 = vpack.c.b16 %v475, %v474
        %v582 = vpack.c.b16 %v477, %v476
        %v583 = vpack.c.b16 %v479, %v478
        %v584 = vpack.c.b16 %v481, %v480
        %v585 = vpack.c.b16 %v483, %v482
        %v586 = vpack.c.b16 %v485, %v484
        %v587 = vpack.c.b16 %v487, %v486
        %v588 = vpack.c.b16 %v489, %v488
        %v589 = vpack.c.b16 %v491, %v490
        %v590 = vpack.c.b16 %v493, %v492
        %v591 = vpack.c.b16 %v495, %v494
        %v592 = vpack.c.b16 %v497, %v496
        %v593 = vpack.c.b16 %v499, %v498
        %v594 = vpack.c.b16 %v501, %v500
        %v595 = vpack.c.b16 %v503, %v502
        %v596 = vpack.c.b16 %v505, %v504
        %v597 = vpack.c.b16 %v507, %v506
        %v598 = vpack.c.b16 %v509, %v508
        %v599 = vpack.c.b16 %v511, %v510
        %v600 = vpack.c.b16 %v513, %v512
        %v601 = vpack.c.b16 %v515, %v514
        %v602 = vpack.c.b16 %v517, %v516
        %v603 = vpack.c.b16 %v519, %v518
        %v604 = vpack.c.b16 %v521, %v520
        %v605 = vpack.c.b16 %v523, %v522
        %v606 = vpack.c.b16 %v525, %v524
        %v607 = vpack.c.b16 %v527, %v526
        %v608 = vpack.c.b16 %v529, %v528
        %v609 = vpack.c.b16 %v531, %v530
        %v610 = vpack.c.b16 %v533, %v532
        %v611 = vpack.c.b16 %v535, %v534
        %v612 = vpack.c.b16 %v537, %v536
        %v613 = vpack.c.b16 %v539, %v538
        %v614 = vpack.c.b16 %v541, %v540
        %v615 = vpack.c.b16 %v543, %v542
        %v616 = vpack.c.b16 %v545, %v544
        %v617 = vpack.c.b16 %v547, %v546
        %v618 = vpack.c.b16 %v549, %v548
        %v619 = vpack.c.b16 %v551, %v550
        %v620 = vpack.c.b16 %v553, %v552
        %v621 = vpack.c.b16 %v555, %v554
        %v622 = vpack.c.b16 %v557, %v556
        %v623 = vpack.c.b16 %v559, %v558
        %v628 = vunpack.c.l.b16 %v300
        %v629 = vunpack.c.l.b16 %v301
        %v630 = vunpack.c.l.b16 %v302
        %v631 = vunpack.c.l.b16 %v303
        %v632 = vpack.c.b16 %v629, %v628
        %v633 = vpack.c.b16 %v631, %v630
        %vm635 = vcmask 220160
        %v637 = vsel %vm635, %v560, 0
        %v640 = vsel %vm635, %v561, 0
        %v643 = vsel %vm635, %v562, 0
        %v646 = vsel %vm635, %v563, 0
        %v649 = vsel %vm635, %v564, 0
        %v652 = vsel %vm635, %v565, 0
        %v655 = vsel %vm635, %v566, 0
        %v658 = vsel %vm635, %v567, 0
        %v661 = vsel %vm635, %v568, 0
        %v664 = vsel %vm635, %v569, 0
        %v667 = vsel %vm635, %v570, 0
        %v670 = vsel %vm635, %v571, 0
        %v673 = vsel %vm635, %v572, 0
        %v676 = vsel %vm635, %v573, 0
        %v679 = vsel %vm635, %v574, 0
        %v682 = vsel %vm635, %v575, 0
        %v685 = vsel %vm635, %v576, 0
        %v688 = vsel %vm635, %v577, 0
        %v691 = vsel %vm635, %v578, 0
        %v694 = vsel %vm635, %v579, 0
        %v697 = vsel %vm635, %v580, 0
        %v700 = vsel %vm635, %v581, 0
        %v703 = vsel %vm635, %v582, 0
        %v706 = vsel %vm635, %v583, 0
        %v709 = vsel %vm635, %v584, 0
        %v712 = vsel %vm635, %v585, 0
        %v715 = vsel %vm635, %v586, 0
        %v718 = vsel %vm635, %v587, 0
        %v721 = vsel %vm635, %v588, 0
        %v724 = vsel %vm635, %v589, 0
        %v727 = vsel %vm635, %v590, 0
        %v730 = vsel %vm635, %v591, 0
        %v733 = vsel %vm635, %v592, 0
        %v736 = vsel %vm635, %v593, 0
        %v739 = vsel %vm635, %v594, 0
        %v742 = vsel %vm635, %v595, 0
        %v745 = vsel %vm635, %v596, 0
        %v748 = vsel %vm635, %v597, 0
        %v751 = vsel %vm635, %v598, 0
        %v754 = vsel %vm635, %v599, 0
        %v757 = vsel %vm635, %v600, 0
        %v760 = vsel %vm635, %v601, 0
        %v763 = vsel %vm635, %v602, 0
        %v766 = vsel %vm635, %v603, 0
        %v769 = vsel %vm635, %v604, 0
        %v772 = vsel %vm635, %v605, 0
        %v775 = vsel %vm635, %v606, 0
        %v778 = vsel %vm635, %v607, 0
        %v781 = vsel %vm635, %v608, 0
        %v784 = vsel %vm635, %v609, 0
        %v787 = vsel %vm635, %v610, 0
        %v790 = vsel %vm635, %v611, 0
        %v793 = vsel %vm635, %v612, 0
        %v796 = vsel %vm635, %v613, 0
        %v799 = vsel %vm635, %v614, 0
        %v802 = vsel %vm635, %v615, 0
        %v805 = vsel %vm635, %v616, 0
        %v808 = vsel %vm635, %v617, 0
        %v811 = vsel %vm635, %v618, 0
        %v814 = vsel %vm635, %v619, 0
        %v817 = vsel %vm635, %v620, 0
        %v820 = vsel %vm635, %v621, 0
        %v823 = vsel %vm635, %v622, 0
        %v826 = vsel %vm635, %v623, 0
        %vm828 = vcmask 1044480
        %vm829 = vcmask 1045504
        %v830 = vsel %vm828, 4294967295, 65535
        %v831 = vsel %vm829, %v830, 0
        %v833 = vand.u32 %v633, %v831
        %835 = vmatprep.subr.bf16.mxu0 0
        %836 = vmatpush1.bf16.msra.mxu0 %v632
        %837 = vmatprep.subr.bf16.mxu0 0
        %838 = vmatpush1.bf16.msra.mxu0 %v833
        %839 = vmatprep.subr.bf16.mxu0 0
        %840 = vmatpush1.bf16.msra.mxu0 0
        %841 = vmatprep.subr.bf16.mxu0 0
        %842 = vmatpush1.bf16.msra.mxu0 0
        %843 = vmatprep.subr.bf16.mxu0 0
        %844 = vmatpush1.bf16.msra.mxu0 0
        %845 = vmatprep.subr.bf16.mxu0 0
        %846 = vmatpush1.bf16.msra.mxu0 0
        %847 = vmatprep.subr.bf16.mxu0 0
        %848 = vmatpush1.bf16.msra.mxu0 0
        %849 = vmatprep.subr.bf16.mxu0 0
        %850 = vmatpush1.bf16.msra.mxu0 0
        %851 = vmatprep.subr.bf16.mxu0 0
        %852 = vmatpush1.bf16.msra.mxu0 0
        %853 = vmatprep.subr.bf16.mxu0 0
        %854 = vmatpush1.bf16.msra.mxu0 0
        %855 = vmatprep.subr.bf16.mxu0 0
        %856 = vmatpush1.bf16.msra.mxu0 0
        %857 = vmatprep.subr.bf16.mxu0 0
        %858 = vmatpush1.bf16.msra.mxu0 0
        %859 = vmatprep.subr.bf16.mxu0 0
        %860 = vmatpush1.bf16.msra.mxu0 0
        %861 = vmatprep.subr.bf16.mxu0 0
        %862 = vmatpush1.bf16.msra.mxu0 0
        %863 = vmatprep.subr.bf16.mxu0 0
        %864 = vmatpush1.bf16.msra.mxu0 0
        %865 = vmatprep.subr.bf16.mxu0 0
        %866 = vmatpush1.bf16.msra.mxu0 0
        %867 = vmatprep.mubr.bf16.mxu0 0
        %868 = vmatmul.mubr.bf16.gmra.mrb[0].mxu0 %v637
        %v869 = vpop.f32.mrb[0].mxu0
        %v870 = vadd.f32 0.0, %v869
        %v871 = vpop.f32.mrb[0].mxu0
        %v872 = vpop.f32.mrb[0].mxu0
        %v873 = vadd.f32 0.0, %v872
        %v874 = vpop.f32.mrb[0].mxu0
        %875 = vmatprep.mubr.bf16.mxu0 0
        %876 = vmatmul.mubr.bf16.gmra.mrb[0].mxu0 %v640
        %v877 = vpop.f32.mrb[0].mxu0
        %v878 = vadd.f32 0.0, %v877
        %v879 = vpop.f32.mrb[0].mxu0
        %v880 = vpop.f32.mrb[0].mxu0
        %v881 = vadd.f32 0.0, %v880
        %v882 = vpop.f32.mrb[0].mxu0
        %883 = vmatprep.mubr.bf16.mxu0 0
        %884 = vmatmul.mubr.bf16.gmra.mrb[0].mxu0 %v643
        %v885 = vpop.f32.mrb[0].mxu0
        %v886 = vadd.f32 0.0, %v885
        %v887 = vpop.f32.mrb[0].mxu0
        %v888 = vpop.f32.mrb[0].mxu0
        %v889 = vadd.f32 0.0, %v888
        %v890 = vpop.f32.mrb[0].mxu0
        %891 = vmatprep.mubr.bf16.mxu0 0
        %892 = vmatmul.mubr.bf16.gmra.mrb[0].mxu0 %v646
        %v893 = vpop.f32.mrb[0].mxu0
        %v894 = vadd.f32 0.0, %v893
        %v895 = vpop.f32.mrb[0].mxu0
        %v896 = vpop.f32.mrb[0].mxu0
        %v897 = vadd.f32 0.0, %v896
        %v898 = vpop.f32.mrb[0].mxu0
        %899 = vmatprep.mubr.bf16.mxu0 0
        %900 = vmatmul.mubr.bf16.gmra.mrb[0].mxu0 %v649
        %v901 = vpop.f32.mrb[0].mxu0
        %v902 = vadd.f32 0.0, %v901
        %v903 = vpop.f32.mrb[0].mxu0
        %v904 = vpop.f32.mrb[0].mxu0
        %v905 = vadd.f32 0.0, %v904
        %v906 = vpop.f32.mrb[0].mxu0
        %907 = vmatprep.mubr.bf16.mxu0 0
        %908 = vmatmul.mubr.bf16.gmra.mrb[0].mxu0 %v652
        %v909 = vpop.f32.mrb[0].mxu0
        %v910 = vadd.f32 0.0, %v909
        %v911 = vpop.f32.mrb[0].mxu0
        %v912 = vpop.f32.mrb[0].mxu0
        %v913 = vadd.f32 0.0, %v912
        %v914 = vpop.f32.mrb[0].mxu0
        %915 = vmatprep.mubr.bf16.mxu0 0
        %916 = vmatmul.mubr.bf16.gmra.mrb[0].mxu0 %v655
        %v917 = vpop.f32.mrb[0].mxu0
        %v918 = vadd.f32 0.0, %v917
        %v919 = vpop.f32.mrb[0].mxu0
        %v920 = vpop.f32.mrb[0].mxu0
        %v921 = vadd.f32 0.0, %v920
        %v922 = vpop.f32.mrb[0].mxu0
        %923 = vmatprep.mubr.bf16.mxu0 0
        %924 = vmatmul.mubr.bf16.gmra.mrb[0].mxu0 %v658
        %v925 = vpop.f32.mrb[0].mxu0
        %v926 = vadd.f32 0.0, %v925
        %v927 = vpop.f32.mrb[0].mxu0
        %v928 = vpop.f32.mrb[0].mxu0
        %v929 = vadd.f32 0.0, %v928
        %v930 = vpop.f32.mrb[0].mxu0
        %931 = vmatprep.mubr.bf16.mxu0 0
        %932 = vmatmul.mubr.bf16.gmra.mrb[0].mxu0 %v661
        %v933 = vpop.f32.mrb[0].mxu0
        %v934 = vadd.f32 0.0, %v933
        %v935 = vpop.f32.mrb[0].mxu0
        %v936 = vpop.f32.mrb[0].mxu0
        %v937 = vadd.f32 0.0, %v936
        %v938 = vpop.f32.mrb[0].mxu0
        %939 = vmatprep.mubr.bf16.mxu0 0
        %940 = vmatmul.mubr.bf16.gmra.mrb[0].mxu0 %v664
        %v941 = vpop.f32.mrb[0].mxu0
        %v942 = vadd.f32 0.0, %v941
        %v943 = vpop.f32.mrb[0].mxu0
        %v944 = vpop.f32.mrb[0].mxu0
        %v945 = vadd.f32 0.0, %v944
        %v946 = vpop.f32.mrb[0].mxu0
        %947 = vmatprep.mubr.bf16.mxu0 0
        %948 = vmatmul.mubr.bf16.gmra.mrb[0].mxu0 %v667
        %v949 = vpop.f32.mrb[0].mxu0
        %v950 = vadd.f32 0.0, %v949
        %v951 = vpop.f32.mrb[0].mxu0
        %v952 = vpop.f32.mrb[0].mxu0
        %v953 = vadd.f32 0.0, %v952
        %v954 = vpop.f32.mrb[0].mxu0
        %955 = vmatprep.mubr.bf16.mxu0 0
        %956 = vmatmul.mubr.bf16.gmra.mrb[0].mxu0 %v670
        %v957 = vpop.f32.mrb[0].mxu0
        %v958 = vadd.f32 0.0, %v957
        %v959 = vpop.f32.mrb[0].mxu0
        %v960 = vpop.f32.mrb[0].mxu0
        %v961 = vadd.f32 0.0, %v960
        %v962 = vpop.f32.mrb[0].mxu0
        %963 = vmatprep.mubr.bf16.mxu0 0
        %964 = vmatmul.mubr.bf16.gmra.mrb[0].mxu0 %v673
        %v965 = vpop.f32.mrb[0].mxu0
        %v966 = vadd.f32 0.0, %v965
        %v967 = vpop.f32.mrb[0].mxu0
        %v968 = vpop.f32.mrb[0].mxu0
        %v969 = vadd.f32 0.0, %v968
        %v970 = vpop.f32.mrb[0].mxu0
        %971 = vmatprep.mubr.bf16.mxu0 0
        %972 = vmatmul.mubr.bf16.gmra.mrb[0].mxu0 %v676
        %v973 = vpop.f32.mrb[0].mxu0
        %v974 = vadd.f32 0.0, %v973
        %v975 = vpop.f32.mrb[0].mxu0
        %v976 = vpop.f32.mrb[0].mxu0
        %v977 = vadd.f32 0.0, %v976
        %v978 = vpop.f32.mrb[0].mxu0
        %979 = vmatprep.mubr.bf16.mxu0 0
        %980 = vmatmul.mubr.bf16.gmra.mrb[0].mxu0 %v679
        %v981 = vpop.f32.mrb[0].mxu0
        %v982 = vadd.f32 0.0, %v981
        %v983 = vpop.f32.mrb[0].mxu0
        %v984 = vpop.f32.mrb[0].mxu0
        %v985 = vadd.f32 0.0, %v984
        %v986 = vpop.f32.mrb[0].mxu0
        %987 = vmatprep.mubr.bf16.mxu0 0
        %988 = vmatmul.mubr.bf16.gmra.mrb[0].mxu0 %v682
        %v989 = vpop.f32.mrb[0].mxu0
        %v990 = vadd.f32 0.0, %v989
        %v991 = vpop.f32.mrb[0].mxu0
        %v992 = vpop.f32.mrb[0].mxu0
        %v993 = vadd.f32 0.0, %v992
        %v994 = vpop.f32.mrb[0].mxu0
        %995 = vmatprep.mubr.bf16.mxu0 0
        %996 = vmatmul.mubr.bf16.gmra.mrb[0].mxu0 %v685
        %v997 = vpop.f32.mrb[0].mxu0
        %v998 = vadd.f32 0.0, %v997
        %v999 = vpop.f32.mrb[0].mxu0
        %v1000 = vpop.f32.mrb[0].mxu0
        %v1001 = vadd.f32 0.0, %v1000
        %v1002 = vpop.f32.mrb[0].mxu0
        %1003 = vmatprep.mubr.bf16.mxu0 0
        %1004 = vmatmul.mubr.bf16.gmra.mrb[0].mxu0 %v688
        %v1005 = vpop.f32.mrb[0].mxu0
        %v1006 = vadd.f32 0.0, %v1005
        %v1007 = vpop.f32.mrb[0].mxu0
        %v1008 = vpop.f32.mrb[0].mxu0
        %v1009 = vadd.f32 0.0, %v1008
        %v1010 = vpop.f32.mrb[0].mxu0
        %1011 = vmatprep.mubr.bf16.mxu0 0
        %1012 = vmatmul.mubr.bf16.gmra.mrb[0].mxu0 %v691
        %v1013 = vpop.f32.mrb[0].mxu0
        %v1014 = vadd.f32 0.0, %v1013
        %v1015 = vpop.f32.mrb[0].mxu0
        %v1016 = vpop.f32.mrb[0].mxu0
        %v1017 = vadd.f32 0.0, %v1016
        %v1018 = vpop.f32.mrb[0].mxu0
        %1019 = vmatprep.mubr.bf16.mxu0 0
        %1020 = vmatmul.mubr.bf16.gmra.mrb[0].mxu0 %v694
        %v1021 = vpop.f32.mrb[0].mxu0
        %v1022 = vadd.f32 0.0, %v1021
        %v1023 = vpop.f32.mrb[0].mxu0
        %v1024 = vpop.f32.mrb[0].mxu0
        %v1025 = vadd.f32 0.0, %v1024
        %v1026 = vpop.f32.mrb[0].mxu0
        %1027 = vmatprep.mubr.bf16.mxu0 0
        %1028 = vmatmul.mubr.bf16.gmra.mrb[0].mxu0 %v697
        %v1029 = vpop.f32.mrb[0].mxu0
        %v1030 = vadd.f32 0.0, %v1029
        %v1031 = vpop.f32.mrb[0].mxu0
        %v1032 = vpop.f32.mrb[0].mxu0
        %v1033 = vadd.f32 0.0, %v1032
        %v1034 = vpop.f32.mrb[0].mxu0
        %1035 = vmatprep.mubr.bf16.mxu0 0
        %1036 = vmatmul.mubr.bf16.gmra.mrb[0].mxu0 %v700
        %v1037 = vpop.f32.mrb[0].mxu0
        %v1038 = vadd.f32 0.0, %v1037
        %v1039 = vpop.f32.mrb[0].mxu0
        %v1040 = vpop.f32.mrb[0].mxu0
        %v1041 = vadd.f32 0.0, %v1040
        %v1042 = vpop.f32.mrb[0].mxu0
        %1043 = vmatprep.mubr.bf16.mxu0 0
        %1044 = vmatmul.mubr.bf16.gmra.mrb[0].mxu0 %v703
        %v1045 = vpop.f32.mrb[0].mxu0
        %v1046 = vadd.f32 0.0, %v1045
        %v1047 = vpop.f32.mrb[0].mxu0
        %v1048 = vpop.f32.mrb[0].mxu0
        %v1049 = vadd.f32 0.0, %v1048
        %v1050 = vpop.f32.mrb[0].mxu0
        %1051 = vmatprep.mubr.bf16.mxu0 0
        %1052 = vmatmul.mubr.bf16.gmra.mrb[0].mxu0 %v706
        %v1053 = vpop.f32.mrb[0].mxu0
        %v1054 = vadd.f32 0.0, %v1053
        %v1055 = vpop.f32.mrb[0].mxu0
        %v1056 = vpop.f32.mrb[0].mxu0
        %v1057 = vadd.f32 0.0, %v1056
        %v1058 = vpop.f32.mrb[0].mxu0
        %1059 = vmatprep.mubr.bf16.mxu0 0
        %1060 = vmatmul.mubr.bf16.gmra.mrb[0].mxu0 %v709
        %v1061 = vpop.f32.mrb[0].mxu0
        %v1062 = vadd.f32 0.0, %v1061
        %v1063 = vpop.f32.mrb[0].mxu0
        %v1064 = vpop.f32.mrb[0].mxu0
        %v1065 = vadd.f32 0.0, %v1064
        %v1066 = vpop.f32.mrb[0].mxu0
        %1067 = vmatprep.mubr.bf16.mxu0 0
        %1068 = vmatmul.mubr.bf16.gmra.mrb[0].mxu0 %v712
        %v1069 = vpop.f32.mrb[0].mxu0
        %v1070 = vadd.f32 0.0, %v1069
        %v1071 = vpop.f32.mrb[0].mxu0
        %v1072 = vpop.f32.mrb[0].mxu0
        %v1073 = vadd.f32 0.0, %v1072
        %v1074 = vpop.f32.mrb[0].mxu0
        %1075 = vmatprep.mubr.bf16.mxu0 0
        %1076 = vmatmul.mubr.bf16.gmra.mrb[0].mxu0 %v715
        %v1077 = vpop.f32.mrb[0].mxu0
        %v1078 = vadd.f32 0.0, %v1077
        %v1079 = vpop.f32.mrb[0].mxu0
        %v1080 = vpop.f32.mrb[0].mxu0
        %v1081 = vadd.f32 0.0, %v1080
        %v1082 = vpop.f32.mrb[0].mxu0
        %1083 = vmatprep.mubr.bf16.mxu0 0
        %1084 = vmatmul.mubr.bf16.gmra.mrb[0].mxu0 %v718
        %v1085 = vpop.f32.mrb[0].mxu0
        %v1086 = vadd.f32 0.0, %v1085
        %v1087 = vpop.f32.mrb[0].mxu0
        %v1088 = vpop.f32.mrb[0].mxu0
        %v1089 = vadd.f32 0.0, %v1088
        %v1090 = vpop.f32.mrb[0].mxu0
        %1091 = vmatprep.mubr.bf16.mxu0 0
        %1092 = vmatmul.mubr.bf16.gmra.mrb[0].mxu0 %v721
        %v1093 = vpop.f32.mrb[0].mxu0
        %v1094 = vadd.f32 0.0, %v1093
        %v1095 = vpop.f32.mrb[0].mxu0
        %v1096 = vpop.f32.mrb[0].mxu0
        %v1097 = vadd.f32 0.0, %v1096
        %v1098 = vpop.f32.mrb[0].mxu0
        %1099 = vmatprep.mubr.bf16.mxu0 0
        %1100 = vmatmul.mubr.bf16.gmra.mrb[0].mxu0 %v724
        %v1101 = vpop.f32.mrb[0].mxu0
        %v1102 = vadd.f32 0.0, %v1101
        %v1103 = vpop.f32.mrb[0].mxu0
        %v1104 = vpop.f32.mrb[0].mxu0
        %v1105 = vadd.f32 0.0, %v1104
        %v1106 = vpop.f32.mrb[0].mxu0
        %1107 = vmatprep.mubr.bf16.mxu0 0
        %1108 = vmatmul.mubr.bf16.gmra.mrb[0].mxu0 %v727
        %v1109 = vpop.f32.mrb[0].mxu0
        %v1110 = vadd.f32 0.0, %v1109
        %v1111 = vpop.f32.mrb[0].mxu0
        %v1112 = vpop.f32.mrb[0].mxu0
        %v1113 = vadd.f32 0.0, %v1112
        %v1114 = vpop.f32.mrb[0].mxu0
        %1115 = vmatprep.mubr.bf16.mxu0 0
        %1116 = vmatmul.mubr.bf16.gmra.mrb[0].mxu0 %v730
        %v1117 = vpop.f32.mrb[0].mxu0
        %v1118 = vadd.f32 0.0, %v1117
        %v1119 = vpop.f32.mrb[0].mxu0
        %v1120 = vpop.f32.mrb[0].mxu0
        %v1121 = vadd.f32 0.0, %v1120
        %v1122 = vpop.f32.mrb[0].mxu0
        %1123 = vmatprep.mubr.bf16.mxu0 0
        %1124 = vmatmul.mubr.bf16.gmra.mrb[0].mxu0 %v733
        %v1125 = vpop.f32.mrb[0].mxu0
        %v1126 = vadd.f32 0.0, %v1125
        %v1127 = vpop.f32.mrb[0].mxu0
        %v1128 = vpop.f32.mrb[0].mxu0
        %v1129 = vadd.f32 0.0, %v1128
        %v1130 = vpop.f32.mrb[0].mxu0
        %1131 = vmatprep.mubr.bf16.mxu0 0
        %1132 = vmatmul.mubr.bf16.gmra.mrb[0].mxu0 %v736
        %v1133 = vpop.f32.mrb[0].mxu0
        %v1134 = vadd.f32 0.0, %v1133
        %v1135 = vpop.f32.mrb[0].mxu0
        %v1136 = vpop.f32.mrb[0].mxu0
        %v1137 = vadd.f32 0.0, %v1136
        %v1138 = vpop.f32.mrb[0].mxu0
        %1139 = vmatprep.mubr.bf16.mxu0 0
        %1140 = vmatmul.mubr.bf16.gmra.mrb[0].mxu0 %v739
        %v1141 = vpop.f32.mrb[0].mxu0
        %v1142 = vadd.f32 0.0, %v1141
        %v1143 = vpop.f32.mrb[0].mxu0
        %v1144 = vpop.f32.mrb[0].mxu0
        %v1145 = vadd.f32 0.0, %v1144
        %v1146 = vpop.f32.mrb[0].mxu0
        %1147 = vmatprep.mubr.bf16.mxu0 0
        %1148 = vmatmul.mubr.bf16.gmra.mrb[0].mxu0 %v742
        %v1149 = vpop.f32.mrb[0].mxu0
        %v1150 = vadd.f32 0.0, %v1149
        %v1151 = vpop.f32.mrb[0].mxu0
        %v1152 = vpop.f32.mrb[0].mxu0
        %v1153 = vadd.f32 0.0, %v1152
        %v1154 = vpop.f32.mrb[0].mxu0
        %1155 = vmatprep.mubr.bf16.mxu0 0
        %1156 = vmatmul.mubr.bf16.gmra.mrb[0].mxu0 %v745
        %v1157 = vpop.f32.mrb[0].mxu0
        %v1158 = vadd.f32 0.0, %v1157
        %v1159 = vpop.f32.mrb[0].mxu0
        %v1160 = vpop.f32.mrb[0].mxu0
        %v1161 = vadd.f32 0.0, %v1160
        %v1162 = vpop.f32.mrb[0].mxu0
        %1163 = vmatprep.mubr.bf16.mxu0 0
        %1164 = vmatmul.mubr.bf16.gmra.mrb[0].mxu0 %v748
        %v1165 = vpop.f32.mrb[0].mxu0
        %v1166 = vadd.f32 0.0, %v1165
        %v1167 = vpop.f32.mrb[0].mxu0
        %v1168 = vpop.f32.mrb[0].mxu0
        %v1169 = vadd.f32 0.0, %v1168
        %v1170 = vpop.f32.mrb[0].mxu0
        %1171 = vmatprep.mubr.bf16.mxu0 0
        %1172 = vmatmul.mubr.bf16.gmra.mrb[0].mxu0 %v751
        %v1173 = vpop.f32.mrb[0].mxu0
        %v1174 = vadd.f32 0.0, %v1173
        %v1175 = vpop.f32.mrb[0].mxu0
        %v1176 = vpop.f32.mrb[0].mxu0
        %v1177 = vadd.f32 0.0, %v1176
        %v1178 = vpop.f32.mrb[0].mxu0
        %1179 = vmatprep.mubr.bf16.mxu0 0
        %1180 = vmatmul.mubr.bf16.gmra.mrb[0].mxu0 %v754
        %v1181 = vpop.f32.mrb[0].mxu0
        %v1182 = vadd.f32 0.0, %v1181
        %v1183 = vpop.f32.mrb[0].mxu0
        %v1184 = vpop.f32.mrb[0].mxu0
        %v1185 = vadd.f32 0.0, %v1184
        %v1186 = vpop.f32.mrb[0].mxu0
        %1187 = vmatprep.mubr.bf16.mxu0 0
        %1188 = vmatmul.mubr.bf16.gmra.mrb[0].mxu0 %v757
        %v1189 = vpop.f32.mrb[0].mxu0
        %v1190 = vadd.f32 0.0, %v1189
        %v1191 = vpop.f32.mrb[0].mxu0
        %v1192 = vpop.f32.mrb[0].mxu0
        %v1193 = vadd.f32 0.0, %v1192
        %v1194 = vpop.f32.mrb[0].mxu0
        %1195 = vmatprep.mubr.bf16.mxu0 0
        %1196 = vmatmul.mubr.bf16.gmra.mrb[0].mxu0 %v760
        %v1197 = vpop.f32.mrb[0].mxu0
        %v1198 = vadd.f32 0.0, %v1197
        %v1199 = vpop.f32.mrb[0].mxu0
        %v1200 = vpop.f32.mrb[0].mxu0
        %v1201 = vadd.f32 0.0, %v1200
        %v1202 = vpop.f32.mrb[0].mxu0
        %1203 = vmatprep.mubr.bf16.mxu0 0
        %1204 = vmatmul.mubr.bf16.gmra.mrb[0].mxu0 %v763
        %v1205 = vpop.f32.mrb[0].mxu0
        %v1206 = vadd.f32 0.0, %v1205
        %v1207 = vpop.f32.mrb[0].mxu0
        %v1208 = vpop.f32.mrb[0].mxu0
        %v1209 = vadd.f32 0.0, %v1208
        %v1210 = vpop.f32.mrb[0].mxu0
        %1211 = vmatprep.mubr.bf16.mxu0 0
        %1212 = vmatmul.mubr.bf16.gmra.mrb[0].mxu0 %v766
        %v1213 = vpop.f32.mrb[0].mxu0
        %v1214 = vadd.f32 0.0, %v1213
        %v1215 = vpop.f32.mrb[0].mxu0
        %v1216 = vpop.f32.mrb[0].mxu0
        %v1217 = vadd.f32 0.0, %v1216
        %v1218 = vpop.f32.mrb[0].mxu0
        %1219 = vmatprep.mubr.bf16.mxu0 0
        %1220 = vmatmul.mubr.bf16.gmra.mrb[0].mxu0 %v769
        %v1221 = vpop.f32.mrb[0].mxu0
        %v1222 = vadd.f32 0.0, %v1221
        %v1223 = vpop.f32.mrb[0].mxu0
        %v1224 = vpop.f32.mrb[0].mxu0
        %v1225 = vadd.f32 0.0, %v1224
        %v1226 = vpop.f32.mrb[0].mxu0
        %1227 = vmatprep.mubr.bf16.mxu0 0
        %1228 = vmatmul.mubr.bf16.gmra.mrb[0].mxu0 %v772
        %v1229 = vpop.f32.mrb[0].mxu0
        %v1230 = vadd.f32 0.0, %v1229
        %v1231 = vpop.f32.mrb[0].mxu0
        %v1232 = vpop.f32.mrb[0].mxu0
        %v1233 = vadd.f32 0.0, %v1232
        %v1234 = vpop.f32.mrb[0].mxu0
        %1235 = vmatprep.mubr.bf16.mxu0 0
        %1236 = vmatmul.mubr.bf16.gmra.mrb[0].mxu0 %v775
        %v1237 = vpop.f32.mrb[0].mxu0
        %v1238 = vadd.f32 0.0, %v1237
        %v1239 = vpop.f32.mrb[0].mxu0
        %v1240 = vpop.f32.mrb[0].mxu0
        %v1241 = vadd.f32 0.0, %v1240
        %v1242 = vpop.f32.mrb[0].mxu0
        %1243 = vmatprep.mubr.bf16.mxu0 0
        %1244 = vmatmul.mubr.bf16.gmra.mrb[0].mxu0 %v778
        %v1245 = vpop.f32.mrb[0].mxu0
        %v1246 = vadd.f32 0.0, %v1245
        %v1247 = vpop.f32.mrb[0].mxu0
        %v1248 = vpop.f32.mrb[0].mxu0
        %v1249 = vadd.f32 0.0, %v1248
        %v1250 = vpop.f32.mrb[0].mxu0
        %1251 = vmatprep.mubr.bf16.mxu0 0
        %1252 = vmatmul.mubr.bf16.gmra.mrb[0].mxu0 %v781
        %v1253 = vpop.f32.mrb[0].mxu0
        %v1254 = vadd.f32 0.0, %v1253
        %v1255 = vpop.f32.mrb[0].mxu0
        %v1256 = vpop.f32.mrb[0].mxu0
        %v1257 = vadd.f32 0.0, %v1256
        %v1258 = vpop.f32.mrb[0].mxu0
        %1259 = vmatprep.mubr.bf16.mxu0 0
        %1260 = vmatmul.mubr.bf16.gmra.mrb[0].mxu0 %v784
        %v1261 = vpop.f32.mrb[0].mxu0
        %v1262 = vadd.f32 0.0, %v1261
        %v1263 = vpop.f32.mrb[0].mxu0
        %v1264 = vpop.f32.mrb[0].mxu0
        %v1265 = vadd.f32 0.0, %v1264
        %v1266 = vpop.f32.mrb[0].mxu0
        %1267 = vmatprep.mubr.bf16.mxu0 0
        %1268 = vmatmul.mubr.bf16.gmra.mrb[0].mxu0 %v787
        %v1269 = vpop.f32.mrb[0].mxu0
        %v1270 = vadd.f32 0.0, %v1269
        %v1271 = vpop.f32.mrb[0].mxu0
        %v1272 = vpop.f32.mrb[0].mxu0
        %v1273 = vadd.f32 0.0, %v1272
        %v1274 = vpop.f32.mrb[0].mxu0
        %1275 = vmatprep.mubr.bf16.mxu0 0
        %1276 = vmatmul.mubr.bf16.gmra.mrb[0].mxu0 %v790
        %v1277 = vpop.f32.mrb[0].mxu0
        %v1278 = vadd.f32 0.0, %v1277
        %v1279 = vpop.f32.mrb[0].mxu0
        %v1280 = vpop.f32.mrb[0].mxu0
        %v1281 = vadd.f32 0.0, %v1280
        %v1282 = vpop.f32.mrb[0].mxu0
        %1283 = vmatprep.mubr.bf16.mxu0 0
        %1284 = vmatmul.mubr.bf16.gmra.mrb[0].mxu0 %v793
        %v1285 = vpop.f32.mrb[0].mxu0
        %v1286 = vadd.f32 0.0, %v1285
        %v1287 = vpop.f32.mrb[0].mxu0
        %v1288 = vpop.f32.mrb[0].mxu0
        %v1289 = vadd.f32 0.0, %v1288
        %v1290 = vpop.f32.mrb[0].mxu0
        %1291 = vmatprep.mubr.bf16.mxu0 0
        %1292 = vmatmul.mubr.bf16.gmra.mrb[0].mxu0 %v796
        %v1293 = vpop.f32.mrb[0].mxu0
        %v1294 = vadd.f32 0.0, %v1293
        %v1295 = vpop.f32.mrb[0].mxu0
        %v1296 = vpop.f32.mrb[0].mxu0
        %v1297 = vadd.f32 0.0, %v1296
        %v1298 = vpop.f32.mrb[0].mxu0
        %1299 = vmatprep.mubr.bf16.mxu0 0
        %1300 = vmatmul.mubr.bf16.gmra.mrb[0].mxu0 %v799
        %v1301 = vpop.f32.mrb[0].mxu0
        %v1302 = vadd.f32 0.0, %v1301
        %v1303 = vpop.f32.mrb[0].mxu0
        %v1304 = vpop.f32.mrb[0].mxu0
        %v1305 = vadd.f32 0.0, %v1304
        %v1306 = vpop.f32.mrb[0].mxu0
        %1307 = vmatprep.mubr.bf16.mxu0 0
        %1308 = vmatmul.mubr.bf16.gmra.mrb[0].mxu0 %v802
        %v1309 = vpop.f32.mrb[0].mxu0
        %v1310 = vadd.f32 0.0, %v1309
        %v1311 = vpop.f32.mrb[0].mxu0
        %v1312 = vpop.f32.mrb[0].mxu0
        %v1313 = vadd.f32 0.0, %v1312
        %v1314 = vpop.f32.mrb[0].mxu0
        %1315 = vmatprep.mubr.bf16.mxu0 0
        %1316 = vmatmul.mubr.bf16.gmra.mrb[0].mxu0 %v805
        %v1317 = vpop.f32.mrb[0].mxu0
        %v1318 = vadd.f32 0.0, %v1317
        %v1319 = vpop.f32.mrb[0].mxu0
        %v1320 = vpop.f32.mrb[0].mxu0
        %v1321 = vadd.f32 0.0, %v1320
        %v1322 = vpop.f32.mrb[0].mxu0
        %1323 = vmatprep.mubr.bf16.mxu0 0
        %1324 = vmatmul.mubr.bf16.gmra.mrb[0].mxu0 %v808
        %v1325 = vpop.f32.mrb[0].mxu0
        %v1326 = vadd.f32 0.0, %v1325
        %v1327 = vpop.f32.mrb[0].mxu0
        %v1328 = vpop.f32.mrb[0].mxu0
        %v1329 = vadd.f32 0.0, %v1328
        %v1330 = vpop.f32.mrb[0].mxu0
        %1331 = vmatprep.mubr.bf16.mxu0 0
        %1332 = vmatmul.mubr.bf16.gmra.mrb[0].mxu0 %v811
        %v1333 = vpop.f32.mrb[0].mxu0
        %v1334 = vadd.f32 0.0, %v1333
        %v1335 = vpop.f32.mrb[0].mxu0
        %v1336 = vpop.f32.mrb[0].mxu0
        %v1337 = vadd.f32 0.0, %v1336
        %v1338 = vpop.f32.mrb[0].mxu0
        %1339 = vmatprep.mubr.bf16.mxu0 0
        %1340 = vmatmul.mubr.bf16.gmra.mrb[0].mxu0 %v814
        %v1341 = vpop.f32.mrb[0].mxu0
        %v1342 = vadd.f32 0.0, %v1341
        %v1343 = vpop.f32.mrb[0].mxu0
        %v1344 = vpop.f32.mrb[0].mxu0
        %v1345 = vadd.f32 0.0, %v1344
        %v1346 = vpop.f32.mrb[0].mxu0
        %1347 = vmatprep.mubr.bf16.mxu0 0
        %1348 = vmatmul.mubr.bf16.gmra.mrb[0].mxu0 %v817
        %v1349 = vpop.f32.mrb[0].mxu0
        %v1350 = vadd.f32 0.0, %v1349
        %v1351 = vpop.f32.mrb[0].mxu0
        %v1352 = vpop.f32.mrb[0].mxu0
        %v1353 = vadd.f32 0.0, %v1352
        %v1354 = vpop.f32.mrb[0].mxu0
        %1355 = vmatprep.mubr.bf16.mxu0 0
        %1356 = vmatmul.mubr.bf16.gmra.mrb[0].mxu0 %v820
        %v1357 = vpop.f32.mrb[0].mxu0
        %v1358 = vadd.f32 0.0, %v1357
        %v1359 = vpop.f32.mrb[0].mxu0
        %v1360 = vpop.f32.mrb[0].mxu0
        %v1361 = vadd.f32 0.0, %v1360
        %v1362 = vpop.f32.mrb[0].mxu0
        %1363 = vmatprep.mubr.bf16.mxu0 0
        %1364 = vmatmul.mubr.bf16.gmra.mrb[0].mxu0 %v823
        %v1365 = vpop.f32.mrb[0].mxu0
        %v1366 = vadd.f32 0.0, %v1365
        %v1367 = vpop.f32.mrb[0].mxu0
        %v1368 = vpop.f32.mrb[0].mxu0
        %v1369 = vadd.f32 0.0, %v1368
        %v1370 = vpop.f32.mrb[0].mxu0
        %1371 = vmatprep.mubr.bf16.mxu0 0
        %1372 = vmatmul.mubr.bf16.gmra.mrb[0].mxu0 %v826
        %v1373 = vpop.f32.mrb[0].mxu0
        %v1374 = vadd.f32 0.0, %v1373
        %v1375 = vpop.f32.mrb[0].mxu0
        %v1376 = vpop.f32.mrb[0].mxu0
        %v1377 = vadd.f32 0.0, %v1376
        %v1378 = vpop.f32.mrb[0].mxu0
        %1379 = vdwg.mxu0
        %vm1380 = vcmask 261120
        %1381 = vst.msk [vmem:[#allocation2] sm:$0xff] %vm1380, %v870
        %1382 = vst.msk [vmem:[#allocation2 + $0x8] sm:$0xff] %vm1380, %v873
        %1383 = vst.msk [vmem:[#allocation2 + $0x10] sm:$0xff] %vm1380, %v878
        %1384 = vst.msk [vmem:[#allocation2 + $0x18] sm:$0xff] %vm1380, %v881
        %1385 = vst.msk [vmem:[#allocation2 + $0x20] sm:$0xff] %vm1380, %v886
        %1386 = vst.msk [vmem:[#allocation2 + $0x28] sm:$0xff] %vm1380, %v889
        %1387 = vst.msk [vmem:[#allocation2 + $0x30] sm:$0xff] %vm1380, %v894
        %1388 = vst.msk [vmem:[#allocation2 + $0x38] sm:$0xff] %vm1380, %v897
        %1389 = vst.msk [vmem:[#allocation2 + $0x40] sm:$0xff] %vm1380, %v902
        %1390 = vst.msk [vmem:[#allocation2 + $0x48] sm:$0xff] %vm1380, %v905
        %1391 = vst.msk [vmem:[#allocation2 + $0x50] sm:$0xff] %vm1380, %v910
        %1392 = vst.msk [vmem:[#allocation2 + $0x58] sm:$0xff] %vm1380, %v913
        %1393 = vst.msk [vmem:[#allocation2 + $0x60] sm:$0xff] %vm1380, %v918
        %1394 = vst.msk [vmem:[#allocation2 + $0x68] sm:$0xff] %vm1380, %v921
        %1395 = vst.msk [vmem:[#allocation2 + $0x70] sm:$0xff] %vm1380, %v926
        %1396 = vst.msk [vmem:[#allocation2 + $0x78] sm:$0xff] %vm1380, %v929
        %1397 = vst.msk [vmem:[#allocation2 + $0x80] sm:$0xff] %vm1380, %v934
        %1398 = vst.msk [vmem:[#allocation2 + $0x88] sm:$0xff] %vm1380, %v937
        %1399 = vst.msk [vmem:[#allocation2 + $0x90] sm:$0xff] %vm1380, %v942
        %1400 = vst.msk [vmem:[#allocation2 + $0x98] sm:$0xff] %vm1380, %v945
        %1401 = vst.msk [vmem:[#allocation2 + $0xa0] sm:$0xff] %vm1380, %v950
        %1402 = vst.msk [vmem:[#allocation2 + $0xa8] sm:$0xff] %vm1380, %v953
        %1403 = vst.msk [vmem:[#allocation2 + $0xb0] sm:$0xff] %vm1380, %v958
        %1404 = vst.msk [vmem:[#allocation2 + $0xb8] sm:$0xff] %vm1380, %v961
        %1405 = vst.msk [vmem:[#allocation2 + $0xc0] sm:$0xff] %vm1380, %v966
        %1406 = vst.msk [vmem:[#allocation2 + $0xc8] sm:$0xff] %vm1380, %v969
        %1407 = vst.msk [vmem:[#allocation2 + $0xd0] sm:$0xff] %vm1380, %v974
        %1408 = vst.msk [vmem:[#allocation2 + $0xd8] sm:$0xff] %vm1380, %v977
        %1409 = vst.msk [vmem:[#allocation2 + $0xe0] sm:$0xff] %vm1380, %v982
        %1410 = vst.msk [vmem:[#allocation2 + $0xe8] sm:$0xff] %vm1380, %v985
        %1411 = vst.msk [vmem:[#allocation2 + $0xf0] sm:$0xff] %vm1380, %v990
        %1412 = vst.msk [vmem:[#allocation2 + $0xf8] sm:$0xff] %vm1380, %v993
        %1413 = vst.msk [vmem:[#allocation2 + $0x100] sm:$0xff] %vm1380, %v998
        %1414 = vst.msk [vmem:[#allocation2 + $0x108] sm:$0xff] %vm1380, %v1001
        %1415 = vst.msk [vmem:[#allocation2 + $0x110] sm:$0xff] %vm1380, %v1006
        %1416 = vst.msk [vmem:[#allocation2 + $0x118] sm:$0xff] %vm1380, %v1009
        %1417 = vst.msk [vmem:[#allocation2 + $0x120] sm:$0xff] %vm1380, %v1014
        %1418 = vst.msk [vmem:[#allocation2 + $0x128] sm:$0xff] %vm1380, %v1017
        %1419 = vst.msk [vmem:[#allocation2 + $0x130] sm:$0xff] %vm1380, %v1022
        %1420 = vst.msk [vmem:[#allocation2 + $0x138] sm:$0xff] %vm1380, %v1025
        %1421 = vst.msk [vmem:[#allocation2 + $0x140] sm:$0xff] %vm1380, %v1030
        %1422 = vst.msk [vmem:[#allocation2 + $0x148] sm:$0xff] %vm1380, %v1033
        %1423 = vst.msk [vmem:[#allocation2 + $0x150] sm:$0xff] %vm1380, %v1038
        %1424 = vst.msk [vmem:[#allocation2 + $0x158] sm:$0xff] %vm1380, %v1041
        %1425 = vst.msk [vmem:[#allocation2 + $0x160] sm:$0xff] %vm1380, %v1046
        %1426 = vst.msk [vmem:[#allocation2 + $0x168] sm:$0xff] %vm1380, %v1049
        %1427 = vst.msk [vmem:[#allocation2 + $0x170] sm:$0xff] %vm1380, %v1054
        %1428 = vst.msk [vmem:[#allocation2 + $0x178] sm:$0xff] %vm1380, %v1057
        %1429 = vst.msk [vmem:[#allocation2 + $0x180] sm:$0xff] %vm1380, %v1062
        %1430 = vst.msk [vmem:[#allocation2 + $0x188] sm:$0xff] %vm1380, %v1065
        %1431 = vst.msk [vmem:[#allocation2 + $0x190] sm:$0xff] %vm1380, %v1070
        %1432 = vst.msk [vmem:[#allocation2 + $0x198] sm:$0xff] %vm1380, %v1073
        %1433 = vst.msk [vmem:[#allocation2 + $0x1a0] sm:$0xff] %vm1380, %v1078
        %1434 = vst.msk [vmem:[#allocation2 + $0x1a8] sm:$0xff] %vm1380, %v1081
        %1435 = vst.msk [vmem:[#allocation2 + $0x1b0] sm:$0xff] %vm1380, %v1086
        %1436 = vst.msk [vmem:[#allocation2 + $0x1b8] sm:$0xff] %vm1380, %v1089
        %1437 = vst.msk [vmem:[#allocation2 + $0x1c0] sm:$0xff] %vm1380, %v1094
        %1438 = vst.msk [vmem:[#allocation2 + $0x1c8] sm:$0xff] %vm1380, %v1097
        %1439 = vst.msk [vmem:[#allocation2 + $0x1d0] sm:$0xff] %vm1380, %v1102
        %1440 = vst.msk [vmem:[#allocation2 + $0x1d8] sm:$0xff] %vm1380, %v1105
        %1441 = vst.msk [vmem:[#allocation2 + $0x1e0] sm:$0xff] %vm1380, %v1110
        %1442 = vst.msk [vmem:[#allocation2 + $0x1e8] sm:$0xff] %vm1380, %v1113
        %1443 = vst.msk [vmem:[#allocation2 + $0x1f0] sm:$0xff] %vm1380, %v1118
        %1444 = vst.msk [vmem:[#allocation2 + $0x1f8] sm:$0xff] %vm1380, %v1121
        %1445 = vst.msk [vmem:[#allocation2 + $0x200] sm:$0xff] %vm1380, %v1126
        %1446 = vst.msk [vmem:[#allocation2 + $0x208] sm:$0xff] %vm1380, %v1129
        %1447 = vst.msk [vmem:[#allocation2 + $0x210] sm:$0xff] %vm1380, %v1134
        %1448 = vst.msk [vmem:[#allocation2 + $0x218] sm:$0xff] %vm1380, %v1137
        %1449 = vst.msk [vmem:[#allocation2 + $0x220] sm:$0xff] %vm1380, %v1142
        %1450 = vst.msk [vmem:[#allocation2 + $0x228] sm:$0xff] %vm1380, %v1145
        %1451 = vst.msk [vmem:[#allocation2 + $0x230] sm:$0xff] %vm1380, %v1150
        %1452 = vst.msk [vmem:[#allocation2 + $0x238] sm:$0xff] %vm1380, %v1153
        %1453 = vst.msk [vmem:[#allocation2 + $0x240] sm:$0xff] %vm1380, %v1158
        %1454 = vst.msk [vmem:[#allocation2 + $0x248] sm:$0xff] %vm1380, %v1161
        %1455 = vst.msk [vmem:[#allocation2 + $0x250] sm:$0xff] %vm1380, %v1166
        %1456 = vst.msk [vmem:[#allocation2 + $0x258] sm:$0xff] %vm1380, %v1169
        %1457 = vst.msk [vmem:[#allocation2 + $0x260] sm:$0xff] %vm1380, %v1174
        %1458 = vst.msk [vmem:[#allocation2 + $0x268] sm:$0xff] %vm1380, %v1177
        %1459 = vst.msk [vmem:[#allocation2 + $0x270] sm:$0xff] %vm1380, %v1182
        %1460 = vst.msk [vmem:[#allocation2 + $0x278] sm:$0xff] %vm1380, %v1185
        %1461 = vst.msk [vmem:[#allocation2 + $0x280] sm:$0xff] %vm1380, %v1190
        %1462 = vst.msk [vmem:[#allocation2 + $0x288] sm:$0xff] %vm1380, %v1193
        %1463 = vst.msk [vmem:[#allocation2 + $0x290] sm:$0xff] %vm1380, %v1198
        %1464 = vst.msk [vmem:[#allocation2 + $0x298] sm:$0xff] %vm1380, %v1201
        %1465 = vst.msk [vmem:[#allocation2 + $0x2a0] sm:$0xff] %vm1380, %v1206
        %1466 = vst.msk [vmem:[#allocation2 + $0x2a8] sm:$0xff] %vm1380, %v1209
        %1467 = vst.msk [vmem:[#allocation2 + $0x2b0] sm:$0xff] %vm1380, %v1214
        %1468 = vst.msk [vmem:[#allocation2 + $0x2b8] sm:$0xff] %vm1380, %v1217
        %1469 = vst.msk [vmem:[#allocation2 + $0x2c0] sm:$0xff] %vm1380, %v1222
        %1470 = vst.msk [vmem:[#allocation2 + $0x2c8] sm:$0xff] %vm1380, %v1225
        %1471 = vst.msk [vmem:[#allocation2 + $0x2d0] sm:$0xff] %vm1380, %v1230
        %1472 = vst.msk [vmem:[#allocation2 + $0x2d8] sm:$0xff] %vm1380, %v1233
        %1473 = vst.msk [vmem:[#allocation2 + $0x2e0] sm:$0xff] %vm1380, %v1238
        %1474 = vst.msk [vmem:[#allocation2 + $0x2e8] sm:$0xff] %vm1380, %v1241
        %1475 = vst.msk [vmem:[#allocation2 + $0x2f0] sm:$0xff] %vm1380, %v1246
        %1476 = vst.msk [vmem:[#allocation2 + $0x2f8] sm:$0xff] %vm1380, %v1249
        %1477 = vst.msk [vmem:[#allocation2 + $0x300] sm:$0xff] %vm1380, %v1254
        %1478 = vst.msk [vmem:[#allocation2 + $0x308] sm:$0xff] %vm1380, %v1257
        %1479 = vst.msk [vmem:[#allocation2 + $0x310] sm:$0xff] %vm1380, %v1262
        %1480 = vst.msk [vmem:[#allocation2 + $0x318] sm:$0xff] %vm1380, %v1265
        %1481 = vst.msk [vmem:[#allocation2 + $0x320] sm:$0xff] %vm1380, %v1270
        %1482 = vst.msk [vmem:[#allocation2 + $0x328] sm:$0xff] %vm1380, %v1273
        %1483 = vst.msk [vmem:[#allocation2 + $0x330] sm:$0xff] %vm1380, %v1278
        %1484 = vst.msk [vmem:[#allocation2 + $0x338] sm:$0xff] %vm1380, %v1281
        %1485 = vst.msk [vmem:[#allocation2 + $0x340] sm:$0xff] %vm1380, %v1286
        %1486 = vst.msk [vmem:[#allocation2 + $0x348] sm:$0xff] %vm1380, %v1289
        %1487 = vst.msk [vmem:[#allocation2 + $0x350] sm:$0xff] %vm1380, %v1294
        %1488 = vst.msk [vmem:[#allocation2 + $0x358] sm:$0xff] %vm1380, %v1297
        %1489 = vst.msk [vmem:[#allocation2 + $0x360] sm:$0xff] %vm1380, %v1302
        %1490 = vst.msk [vmem:[#allocation2 + $0x368] sm:$0xff] %vm1380, %v1305
        %1491 = vst.msk [vmem:[#allocation2 + $0x370] sm:$0xff] %vm1380, %v1310
        %1492 = vst.msk [vmem:[#allocation2 + $0x378] sm:$0xff] %vm1380, %v1313
        %1493 = vst.msk [vmem:[#allocation2 + $0x380] sm:$0xff] %vm1380, %v1318
        %1494 = vst.msk [vmem:[#allocation2 + $0x388] sm:$0xff] %vm1380, %v1321
        %1495 = vst.msk [vmem:[#allocation2 + $0x390] sm:$0xff] %vm1380, %v1326
        %1496 = vst.msk [vmem:[#allocation2 + $0x398] sm:$0xff] %vm1380, %v1329
        %1497 = vst.msk [vmem:[#allocation2 + $0x3a0] sm:$0xff] %vm1380, %v1334
        %1498 = vst.msk [vmem:[#allocation2 + $0x3a8] sm:$0xff] %vm1380, %v1337
        %1499 = vst.msk [vmem:[#allocation2 + $0x3b0] sm:$0xff] %vm1380, %v1342
        %1500 = vst.msk [vmem:[#allocation2 + $0x3b8] sm:$0xff] %vm1380, %v1345
        %1501 = vst.msk [vmem:[#allocation2 + $0x3c0] sm:$0xff] %vm1380, %v1350
        %1502 = vst.msk [vmem:[#allocation2 + $0x3c8] sm:$0xff] %vm1380, %v1353
        %1503 = vst.msk [vmem:[#allocation2 + $0x3d0] sm:$0xff] %vm1380, %v1358
        %1504 = vst.msk [vmem:[#allocation2 + $0x3d8] sm:$0xff] %vm1380, %v1361
        %1505 = vst.msk [vmem:[#allocation2 + $0x3e0] sm:$0xff] %vm1380, %v1366
        %1506 = vst.msk [vmem:[#allocation2 + $0x3e8] sm:$0xff] %vm1380, %v1369
        %1507 = vst.msk [vmem:[#allocation2 + $0x3f0] sm:$0xff] %vm1380, %v1374
        %1508 = vst.msk [vmem:[#allocation2 + $0x3f8] sm:$0xff] %vm1380, %v1377
        %v1509 = vld [vmem:[#allocation2] sm:$0xff]
        %v1510 = vld [vmem:[#allocation2 + $0x8] sm:$0xff]
        %v1511 = vld [vmem:[#allocation2 + $0x10] sm:$0xff]
        %v1512 = vld [vmem:[#allocation2 + $0x18] sm:$0xff]
        %v1513 = vld [vmem:[#allocation2 + $0x20] sm:$0xff]
        %v1514 = vld [vmem:[#allocation2 + $0x28] sm:$0xff]
        %v1515 = vld [vmem:[#allocation2 + $0x30] sm:$0xff]
        %v1516 = vld [vmem:[#allocation2 + $0x38] sm:$0xff]
        %v1517 = vld [vmem:[#allocation2 + $0x40] sm:$0xff]
        %v1518 = vld [vmem:[#allocation2 + $0x48] sm:$0xff]
        %v1519 = vld [vmem:[#allocation2 + $0x50] sm:$0xff]
        %v1520 = vld [vmem:[#allocation2 + $0x58] sm:$0xff]
        %v1521 = vld [vmem:[#allocation2 + $0x60] sm:$0xff]
        %v1522 = vld [vmem:[#allocation2 + $0x68] sm:$0xff]
        %v1523 = vld [vmem:[#allocation2 + $0x70] sm:$0xff]
        %v1524 = vld [vmem:[#allocation2 + $0x78] sm:$0xff]
        %v1525 = vld [vmem:[#allocation2 + $0x80] sm:$0xff]
        %v1526 = vld [vmem:[#allocation2 + $0x88] sm:$0xff]
        %v1527 = vld [vmem:[#allocation2 + $0x90] sm:$0xff]
        %v1528 = vld [vmem:[#allocation2 + $0x98] sm:$0xff]
        %v1529 = vld [vmem:[#allocation2 + $0xa0] sm:$0xff]
        %v1530 = vld [vmem:[#allocation2 + $0xa8] sm:$0xff]
        %v1531 = vld [vmem:[#allocation2 + $0xb0] sm:$0xff]
        %v1532 = vld [vmem:[#allocation2 + $0xb8] sm:$0xff]
        %v1533 = vld [vmem:[#allocation2 + $0xc0] sm:$0xff]
        %v1534 = vld [vmem:[#allocation2 + $0xc8] sm:$0xff]
        %v1535 = vld [vmem:[#allocation2 + $0xd0] sm:$0xff]
        %v1536 = vld [vmem:[#allocation2 + $0xd8] sm:$0xff]
        %v1537 = vld [vmem:[#allocation2 + $0xe0] sm:$0xff]
        %v1538 = vld [vmem:[#allocation2 + $0xe8] sm:$0xff]
        %v1539 = vld [vmem:[#allocation2 + $0xf0] sm:$0xff]
        %v1540 = vld [vmem:[#allocation2 + $0xf8] sm:$0xff]
        %v1541 = vld [vmem:[#allocation2 + $0x100] sm:$0xff]
        %v1542 = vld [vmem:[#allocation2 + $0x108] sm:$0xff]
        %v1543 = vld [vmem:[#allocation2 + $0x110] sm:$0xff]
        %v1544 = vld [vmem:[#allocation2 + $0x118] sm:$0xff]
        %v1545 = vld [vmem:[#allocation2 + $0x120] sm:$0xff]
        %v1546 = vld [vmem:[#allocation2 + $0x128] sm:$0xff]
        %v1547 = vld [vmem:[#allocation2 + $0x130] sm:$0xff]
        %v1548 = vld [vmem:[#allocation2 + $0x138] sm:$0xff]
        %v1549 = vld [vmem:[#allocation2 + $0x140] sm:$0xff]
        %v1550 = vld [vmem:[#allocation2 + $0x148] sm:$0xff]
        %v1551 = vld [vmem:[#allocation2 + $0x150] sm:$0xff]
        %v1552 = vld [vmem:[#allocation2 + $0x158] sm:$0xff]
        %v1553 = vld [vmem:[#allocation2 + $0x160] sm:$0xff]
        %v1554 = vld [vmem:[#allocation2 + $0x168] sm:$0xff]
        %v1555 = vld [vmem:[#allocation2 + $0x170] sm:$0xff]
        %v1556 = vld [vmem:[#allocation2 + $0x178] sm:$0xff]
        %v1557 = vld [vmem:[#allocation2 + $0x180] sm:$0xff]
        %v1558 = vld [vmem:[#allocation2 + $0x188] sm:$0xff]
        %v1559 = vld [vmem:[#allocation2 + $0x190] sm:$0xff]
        %v1560 = vld [vmem:[#allocation2 + $0x198] sm:$0xff]
        %v1561 = vld [vmem:[#allocation2 + $0x1a0] sm:$0xff]
        %v1562 = vld [vmem:[#allocation2 + $0x1a8] sm:$0xff]
        %v1563 = vld [vmem:[#allocation2 + $0x1b0] sm:$0xff]
        %v1564 = vld [vmem:[#allocation2 + $0x1b8] sm:$0xff]
        %v1565 = vld [vmem:[#allocation2 + $0x1c0] sm:$0xff]
        %v1566 = vld [vmem:[#allocation2 + $0x1c8] sm:$0xff]
        %v1567 = vld [vmem:[#allocation2 + $0x1d0] sm:$0xff]
        %v1568 = vld [vmem:[#allocation2 + $0x1d8] sm:$0xff]
        %v1569 = vld [vmem:[#allocation2 + $0x1e0] sm:$0xff]
        %v1570 = vld [vmem:[#allocation2 + $0x1e8] sm:$0xff]
        %v1571 = vld [vmem:[#allocation2 + $0x1f0] sm:$0xff]
        %v1572 = vld [vmem:[#allocation2 + $0x1f8] sm:$0xff]
        %v1573 = vld [vmem:[#allocation2 + $0x200] sm:$0xff]
        %v1574 = vld [vmem:[#allocation2 + $0x208] sm:$0xff]
        %v1575 = vld [vmem:[#allocation2 + $0x210] sm:$0xff]
        %v1576 = vld [vmem:[#allocation2 + $0x218] sm:$0xff]
        %v1577 = vld [vmem:[#allocation2 + $0x220] sm:$0xff]
        %v1578 = vld [vmem:[#allocation2 + $0x228] sm:$0xff]
        %v1579 = vld [vmem:[#allocation2 + $0x230] sm:$0xff]
        %v1580 = vld [vmem:[#allocation2 + $0x238] sm:$0xff]
        %v1581 = vld [vmem:[#allocation2 + $0x240] sm:$0xff]
        %v1582 = vld [vmem:[#allocation2 + $0x248] sm:$0xff]
        %v1583 = vld [vmem:[#allocation2 + $0x250] sm:$0xff]
        %v1584 = vld [vmem:[#allocation2 + $0x258] sm:$0xff]
        %v1585 = vld [vmem:[#allocation2 + $0x260] sm:$0xff]
        %v1586 = vld [vmem:[#allocation2 + $0x268] sm:$0xff]
        %v1587 = vld [vmem:[#allocation2 + $0x270] sm:$0xff]
        %v1588 = vld [vmem:[#allocation2 + $0x278] sm:$0xff]
        %v1589 = vld [vmem:[#allocation2 + $0x280] sm:$0xff]
        %v1590 = vld [vmem:[#allocation2 + $0x288] sm:$0xff]
        %v1591 = vld [vmem:[#allocation2 + $0x290] sm:$0xff]
        %v1592 = vld [vmem:[#allocation2 + $0x298] sm:$0xff]
        %v1593 = vld [vmem:[#allocation2 + $0x2a0] sm:$0xff]
        %v1594 = vld [vmem:[#allocation2 + $0x2a8] sm:$0xff]
        %v1595 = vld [vmem:[#allocation2 + $0x2b0] sm:$0xff]
        %v1596 = vld [vmem:[#allocation2 + $0x2b8] sm:$0xff]
        %v1597 = vld [vmem:[#allocation2 + $0x2c0] sm:$0xff]
        %v1598 = vld [vmem:[#allocation2 + $0x2c8] sm:$0xff]
        %v1599 = vld [vmem:[#allocation2 + $0x2d0] sm:$0xff]
        %v1600 = vld [vmem:[#allocation2 + $0x2d8] sm:$0xff]
        %v1601 = vld [vmem:[#allocation2 + $0x2e0] sm:$0xff]
        %v1602 = vld [vmem:[#allocation2 + $0x2e8] sm:$0xff]
        %v1603 = vld [vmem:[#allocation2 + $0x2f0] sm:$0xff]
        %v1604 = vld [vmem:[#allocation2 + $0x2f8] sm:$0xff]
        %v1605 = vld [vmem:[#allocation2 + $0x300] sm:$0xff]
        %v1606 = vld [vmem:[#allocation2 + $0x308] sm:$0xff]
        %v1607 = vld [vmem:[#allocation2 + $0x310] sm:$0xff]
        %v1608 = vld [vmem:[#allocation2 + $0x318] sm:$0xff]
        %v1609 = vld [vmem:[#allocation2 + $0x320] sm:$0xff]
        %v1610 = vld [vmem:[#allocation2 + $0x328] sm:$0xff]
        %v1611 = vld [vmem:[#allocation2 + $0x330] sm:$0xff]
        %v1612 = vld [vmem:[#allocation2 + $0x338] sm:$0xff]
        %v1613 = vld [vmem:[#allocation2 + $0x340] sm:$0xff]
        %v1614 = vld [vmem:[#allocation2 + $0x348] sm:$0xff]
        %v1615 = vld [vmem:[#allocation2 + $0x350] sm:$0xff]
        %v1616 = vld [vmem:[#allocation2 + $0x358] sm:$0xff]
        %v1617 = vld [vmem:[#allocation2 + $0x360] sm:$0xff]
        %v1618 = vld [vmem:[#allocation2 + $0x368] sm:$0xff]
        %v1619 = vld [vmem:[#allocation2 + $0x370] sm:$0xff]
        %v1620 = vld [vmem:[#allocation2 + $0x378] sm:$0xff]
        %v1621 = vld [vmem:[#allocation2 + $0x380] sm:$0xff]
        %v1622 = vld [vmem:[#allocation2 + $0x388] sm:$0xff]
        %v1623 = vld [vmem:[#allocation2 + $0x390] sm:$0xff]
        %v1624 = vld [vmem:[#allocation2 + $0x398] sm:$0xff]
        %v1625 = vld [vmem:[#allocation2 + $0x3a0] sm:$0xff]
        %v1626 = vld [vmem:[#allocation2 + $0x3a8] sm:$0xff]
        %v1627 = vld [vmem:[#allocation2 + $0x3b0] sm:$0xff]
        %v1628 = vld [vmem:[#allocation2 + $0x3b8] sm:$0xff]
        %v1629 = vld [vmem:[#allocation2 + $0x3c0] sm:$0xff]
        %v1630 = vld [vmem:[#allocation2 + $0x3c8] sm:$0xff]
        %v1631 = vld [vmem:[#allocation2 + $0x3d0] sm:$0xff]
        %v1632 = vld [vmem:[#allocation2 + $0x3d8] sm:$0xff]
        %v1633 = vld [vmem:[#allocation2 + $0x3e0] sm:$0xff]
        %v1634 = vld [vmem:[#allocation2 + $0x3e8] sm:$0xff]
        %v1635 = vld [vmem:[#allocation2 + $0x3f0] sm:$0xff]
        %v1636 = vld [vmem:[#allocation2 + $0x3f8] sm:$0xff]
        %v1637 = vld [vmem:[%s3] sm:$0x1]
        %v1639 = vlaneseq
        %v1640 = vshrl.u32 %v1639, 7
        %v1641 = vsub.s32 0, %v1640
        %v1642 = vrot.slane %v1637, %v1641
        %v1644 = vadd.f32 %v1509, %v1642
        %v1645 = vadd.f32 %v1510, %v1642
        %v1646 = vadd.f32 %v1511, %v1642
        %v1647 = vadd.f32 %v1512, %v1642
        %v1648 = vadd.f32 %v1513, %v1642
        %v1649 = vadd.f32 %v1514, %v1642
        %v1650 = vadd.f32 %v1515, %v1642
        %v1651 = vadd.f32 %v1516, %v1642
        %v1652 = vadd.f32 %v1517, %v1642
        %v1653 = vadd.f32 %v1518, %v1642
        %v1654 = vadd.f32 %v1519, %v1642
        %v1655 = vadd.f32 %v1520, %v1642
        %v1656 = vadd.f32 %v1521, %v1642
        %v1657 = vadd.f32 %v1522, %v1642
        %v1658 = vadd.f32 %v1523, %v1642
        %v1659 = vadd.f32 %v1524, %v1642
        %v1660 = vadd.f32 %v1525, %v1642
        %v1661 = vadd.f32 %v1526, %v1642
        %v1662 = vadd.f32 %v1527, %v1642
        %v1663 = vadd.f32 %v1528, %v1642
        %v1664 = vadd.f32 %v1529, %v1642
        %v1665 = vadd.f32 %v1530, %v1642
        %v1666 = vadd.f32 %v1531, %v1642
        %v1667 = vadd.f32 %v1532, %v1642
        %v1668 = vadd.f32 %v1533, %v1642
        %v1669 = vadd.f32 %v1534, %v1642
        %v1670 = vadd.f32 %v1535, %v1642
        %v1671 = vadd.f32 %v1536, %v1642
        %v1672 = vadd.f32 %v1537, %v1642
        %v1673 = vadd.f32 %v1538, %v1642
        %v1674 = vadd.f32 %v1539, %v1642
        %v1675 = vadd.f32 %v1540, %v1642
        %v1676 = vadd.f32 %v1541, %v1642
        %v1677 = vadd.f32 %v1542, %v1642
        %v1678 = vadd.f32 %v1543, %v1642
        %v1679 = vadd.f32 %v1544, %v1642
        %v1680 = vadd.f32 %v1545, %v1642
        %v1681 = vadd.f32 %v1546, %v1642
        %v1682 = vadd.f32 %v1547, %v1642
        %v1683 = vadd.f32 %v1548, %v1642
        %v1684 = vadd.f32 %v1549, %v1642
        %v1685 = vadd.f32 %v1550, %v1642
        %v1686 = vadd.f32 %v1551, %v1642
        %v1687 = vadd.f32 %v1552, %v1642
        %v1688 = vadd.f32 %v1553, %v1642
        %v1689 = vadd.f32 %v1554, %v1642
        %v1690 = vadd.f32 %v1555, %v1642
        %v1691 = vadd.f32 %v1556, %v1642
        %v1692 = vadd.f32 %v1557, %v1642
        %v1693 = vadd.f32 %v1558, %v1642
        %v1694 = vadd.f32 %v1559, %v1642
        %v1695 = vadd.f32 %v1560, %v1642
        %v1696 = vadd.f32 %v1561, %v1642
        %v1697 = vadd.f32 %v1562, %v1642
        %v1698 = vadd.f32 %v1563, %v1642
        %v1699 = vadd.f32 %v1564, %v1642
        %v1700 = vadd.f32 %v1565, %v1642
        %v1701 = vadd.f32 %v1566, %v1642
        %v1702 = vadd.f32 %v1567, %v1642
        %v1703 = vadd.f32 %v1568, %v1642
        %v1704 = vadd.f32 %v1569, %v1642
        %v1705 = vadd.f32 %v1570, %v1642
        %v1706 = vadd.f32 %v1571, %v1642
        %v1707 = vadd.f32 %v1572, %v1642
        %v1708 = vadd.f32 %v1573, %v1642
        %v1709 = vadd.f32 %v1574, %v1642
        %v1710 = vadd.f32 %v1575, %v1642
        %v1711 = vadd.f32 %v1576, %v1642
        %v1712 = vadd.f32 %v1577, %v1642
        %v1713 = vadd.f32 %v1578, %v1642
        %v1714 = vadd.f32 %v1579, %v1642
        %v1715 = vadd.f32 %v1580, %v1642
        %v1716 = vadd.f32 %v1581, %v1642
        %v1717 = vadd.f32 %v1582, %v1642
        %v1718 = vadd.f32 %v1583, %v1642
        %v1719 = vadd.f32 %v1584, %v1642
        %v1720 = vadd.f32 %v1585, %v1642
        %v1721 = vadd.f32 %v1586, %v1642
        %v1722 = vadd.f32 %v1587, %v1642
        %v1723 = vadd.f32 %v1588, %v1642
        %v1724 = vadd.f32 %v1589, %v1642
        %v1725 = vadd.f32 %v1590, %v1642
        %v1726 = vadd.f32 %v1591, %v1642
        %v1727 = vadd.f32 %v1592, %v1642
        %v1728 = vadd.f32 %v1593, %v1642
        %v1729 = vadd.f32 %v1594, %v1642
        %v1730 = vadd.f32 %v1595, %v1642
        %v1731 = vadd.f32 %v1596, %v1642
        %v1732 = vadd.f32 %v1597, %v1642
        %v1733 = vadd.f32 %v1598, %v1642
        %v1734 = vadd.f32 %v1599, %v1642
        %v1735 = vadd.f32 %v1600, %v1642
        %v1736 = vadd.f32 %v1601, %v1642
        %v1737 = vadd.f32 %v1602, %v1642
        %v1738 = vadd.f32 %v1603, %v1642
        %v1739 = vadd.f32 %v1604, %v1642
        %v1740 = vadd.f32 %v1605, %v1642
        %v1741 = vadd.f32 %v1606, %v1642
        %v1742 = vadd.f32 %v1607, %v1642
        %v1743 = vadd.f32 %v1608, %v1642
        %v1744 = vadd.f32 %v1609, %v1642
        %v1745 = vadd.f32 %v1610, %v1642
        %v1746 = vadd.f32 %v1611, %v1642
        %v1747 = vadd.f32 %v1612, %v1642
        %v1748 = vadd.f32 %v1613, %v1642
        %v1749 = vadd.f32 %v1614, %v1642
        %v1750 = vadd.f32 %v1615, %v1642
        %v1751 = vadd.f32 %v1616, %v1642
        %v1752 = vadd.f32 %v1617, %v1642
        %v1753 = vadd.f32 %v1618, %v1642
        %v1754 = vadd.f32 %v1619, %v1642
        %v1755 = vadd.f32 %v1620, %v1642
        %v1756 = vadd.f32 %v1621, %v1642
        %v1757 = vadd.f32 %v1622, %v1642
        %v1758 = vadd.f32 %v1623, %v1642
        %v1759 = vadd.f32 %v1624, %v1642
        %v1760 = vadd.f32 %v1625, %v1642
        %v1761 = vadd.f32 %v1626, %v1642
        %v1762 = vadd.f32 %v1627, %v1642
        %v1763 = vadd.f32 %v1628, %v1642
        %v1764 = vadd.f32 %v1629, %v1642
        %v1765 = vadd.f32 %v1630, %v1642
        %v1766 = vadd.f32 %v1631, %v1642
        %v1767 = vadd.f32 %v1632, %v1642
        %v1768 = vadd.f32 %v1633, %v1642
        %v1769 = vadd.f32 %v1634, %v1642
        %v1770 = vadd.f32 %v1635, %v1642
        %v1771 = vadd.f32 %v1636, %v1642
        %v1772 = vmax.f32 %v1644, 0.0
        %v1773 = vmax.f32 %v1645, 0.0
        %v1774 = vmax.f32 %v1646, 0.0
        %v1775 = vmax.f32 %v1647, 0.0
        %v1776 = vmax.f32 %v1648, 0.0
        %v1777 = vmax.f32 %v1649, 0.0
        %v1778 = vmax.f32 %v1650, 0.0
        %v1779 = vmax.f32 %v1651, 0.0
        %v1780 = vmax.f32 %v1652, 0.0
        %v1781 = vmax.f32 %v1653, 0.0
        %v1782 = vmax.f32 %v1654, 0.0
        %v1783 = vmax.f32 %v1655, 0.0
        %v1784 = vmax.f32 %v1656, 0.0
        %v1785 = vmax.f32 %v1657, 0.0
        %v1786 = vmax.f32 %v1658, 0.0
        %v1787 = vmax.f32 %v1659, 0.0
        %v1788 = vmax.f32 %v1660, 0.0
        %v1789 = vmax.f32 %v1661, 0.0
        %v1790 = vmax.f32 %v1662, 0.0
        %v1791 = vmax.f32 %v1663, 0.0
        %v1792 = vmax.f32 %v1664, 0.0
        %v1793 = vmax.f32 %v1665, 0.0
        %v1794 = vmax.f32 %v1666, 0.0
        %v1795 = vmax.f32 %v1667, 0.0
        %v1796 = vmax.f32 %v1668, 0.0
        %v1797 = vmax.f32 %v1669, 0.0
        %v1798 = vmax.f32 %v1670, 0.0
        %v1799 = vmax.f32 %v1671, 0.0
        %v1800 = vmax.f32 %v1672, 0.0
        %v1801 = vmax.f32 %v1673, 0.0
        %v1802 = vmax.f32 %v1674, 0.0
        %v1803 = vmax.f32 %v1675, 0.0
        %v1804 = vmax.f32 %v1676, 0.0
        %v1805 = vmax.f32 %v1677, 0.0
        %v1806 = vmax.f32 %v1678, 0.0
        %v1807 = vmax.f32 %v1679, 0.0
        %v1808 = vmax.f32 %v1680, 0.0
        %v1809 = vmax.f32 %v1681, 0.0
        %v1810 = vmax.f32 %v1682, 0.0
        %v1811 = vmax.f32 %v1683, 0.0
        %v1812 = vmax.f32 %v1684, 0.0
        %v1813 = vmax.f32 %v1685, 0.0
        %v1814 = vmax.f32 %v1686, 0.0
        %v1815 = vmax.f32 %v1687, 0.0
        %v1816 = vmax.f32 %v1688, 0.0
        %v1817 = vmax.f32 %v1689, 0.0
        %v1818 = vmax.f32 %v1690, 0.0
        %v1819 = vmax.f32 %v1691, 0.0
        %v1820 = vmax.f32 %v1692, 0.0
        %v1821 = vmax.f32 %v1693, 0.0
        %v1822 = vmax.f32 %v1694, 0.0
        %v1823 = vmax.f32 %v1695, 0.0
        %v1824 = vmax.f32 %v1696, 0.0
        %v1825 = vmax.f32 %v1697, 0.0
        %v1826 = vmax.f32 %v1698, 0.0
        %v1827 = vmax.f32 %v1699, 0.0
        %v1828 = vmax.f32 %v1700, 0.0
        %v1829 = vmax.f32 %v1701, 0.0
        %v1830 = vmax.f32 %v1702, 0.0
        %v1831 = vmax.f32 %v1703, 0.0
        %v1832 = vmax.f32 %v1704, 0.0
        %v1833 = vmax.f32 %v1705, 0.0
        %v1834 = vmax.f32 %v1706, 0.0
        %v1835 = vmax.f32 %v1707, 0.0
        %v1836 = vmax.f32 %v1708, 0.0
        %v1837 = vmax.f32 %v1709, 0.0
        %v1838 = vmax.f32 %v1710, 0.0
        %v1839 = vmax.f32 %v1711, 0.0
        %v1840 = vmax.f32 %v1712, 0.0
        %v1841 = vmax.f32 %v1713, 0.0
        %v1842 = vmax.f32 %v1714, 0.0
        %v1843 = vmax.f32 %v1715, 0.0
        %v1844 = vmax.f32 %v1716, 0.0
        %v1845 = vmax.f32 %v1717, 0.0
        %v1846 = vmax.f32 %v1718, 0.0
        %v1847 = vmax.f32 %v1719, 0.0
        %v1848 = vmax.f32 %v1720, 0.0
        %v1849 = vmax.f32 %v1721, 0.0
        %v1850 = vmax.f32 %v1722, 0.0
        %v1851 = vmax.f32 %v1723, 0.0
        %v1852 = vmax.f32 %v1724, 0.0
        %v1853 = vmax.f32 %v1725, 0.0
        %v1854 = vmax.f32 %v1726, 0.0
        %v1855 = vmax.f32 %v1727, 0.0
        %v1856 = vmax.f32 %v1728, 0.0
        %v1857 = vmax.f32 %v1729, 0.0
        %v1858 = vmax.f32 %v1730, 0.0
        %v1859 = vmax.f32 %v1731, 0.0
        %v1860 = vmax.f32 %v1732, 0.0
        %v1861 = vmax.f32 %v1733, 0.0
        %v1862 = vmax.f32 %v1734, 0.0
        %v1863 = vmax.f32 %v1735, 0.0
        %v1864 = vmax.f32 %v1736, 0.0
        %v1865 = vmax.f32 %v1737, 0.0
        %v1866 = vmax.f32 %v1738, 0.0
        %v1867 = vmax.f32 %v1739, 0.0
        %v1868 = vmax.f32 %v1740, 0.0
        %v1869 = vmax.f32 %v1741, 0.0
        %v1870 = vmax.f32 %v1742, 0.0
        %v1871 = vmax.f32 %v1743, 0.0
        %v1872 = vmax.f32 %v1744, 0.0
        %v1873 = vmax.f32 %v1745, 0.0
        %v1874 = vmax.f32 %v1746, 0.0
        %v1875 = vmax.f32 %v1747, 0.0
        %v1876 = vmax.f32 %v1748, 0.0
        %v1877 = vmax.f32 %v1749, 0.0
        %v1878 = vmax.f32 %v1750, 0.0
        %v1879 = vmax.f32 %v1751, 0.0
        %v1880 = vmax.f32 %v1752, 0.0
        %v1881 = vmax.f32 %v1753, 0.0
        %v1882 = vmax.f32 %v1754, 0.0
        %v1883 = vmax.f32 %v1755, 0.0
        %v1884 = vmax.f32 %v1756, 0.0
        %v1885 = vmax.f32 %v1757, 0.0
        %v1886 = vmax.f32 %v1758, 0.0
        %v1887 = vmax.f32 %v1759, 0.0
        %v1888 = vmax.f32 %v1760, 0.0
        %v1889 = vmax.f32 %v1761, 0.0
        %v1890 = vmax.f32 %v1762, 0.0
        %v1891 = vmax.f32 %v1763, 0.0
        %v1892 = vmax.f32 %v1764, 0.0
        %v1893 = vmax.f32 %v1765, 0.0
        %v1894 = vmax.f32 %v1766, 0.0
        %v1895 = vmax.f32 %v1767, 0.0
        %v1896 = vmax.f32 %v1768, 0.0
        %v1897 = vmax.f32 %v1769, 0.0
        %v1898 = vmax.f32 %v1770, 0.0
        %v1899 = vmax.f32 %v1771, 0.0
        %v1900 = vpack.c.bf16 %v1773, %v1772
        %v1901 = vpack.c.bf16 %v1775, %v1774
        %v1902 = vpack.c.bf16 %v1777, %v1776
        %v1903 = vpack.c.bf16 %v1779, %v1778
        %v1904 = vpack.c.bf16 %v1781, %v1780
        %v1905 = vpack.c.bf16 %v1783, %v1782
        %v1906 = vpack.c.bf16 %v1785, %v1784
        %v1907 = vpack.c.bf16 %v1787, %v1786
        %v1908 = vpack.c.bf16 %v1789, %v1788
        %v1909 = vpack.c.bf16 %v1791, %v1790
        %v1910 = vpack.c.bf16 %v1793, %v1792
        %v1911 = vpack.c.bf16 %v1795, %v1794
        %v1912 = vpack.c.bf16 %v1797, %v1796
        %v1913 = vpack.c.bf16 %v1799, %v1798
        %v1914 = vpack.c.bf16 %v1801, %v1800
        %v1915 = vpack.c.bf16 %v1803, %v1802
        %v1916 = vpack.c.bf16 %v1805, %v1804
        %v1917 = vpack.c.bf16 %v1807, %v1806
        %v1918 = vpack.c.bf16 %v1809, %v1808
        %v1919 = vpack.c.bf16 %v1811, %v1810
        %v1920 = vpack.c.bf16 %v1813, %v1812
        %v1921 = vpack.c.bf16 %v1815, %v1814
        %v1922 = vpack.c.bf16 %v1817, %v1816
        %v1923 = vpack.c.bf16 %v1819, %v1818
        %v1924 = vpack.c.bf16 %v1821, %v1820
        %v1925 = vpack.c.bf16 %v1823, %v1822
        %v1926 = vpack.c.bf16 %v1825, %v1824
        %v1927 = vpack.c.bf16 %v1827, %v1826
        %v1928 = vpack.c.bf16 %v1829, %v1828
        %v1929 = vpack.c.bf16 %v1831, %v1830
        %v1930 = vpack.c.bf16 %v1833, %v1832
        %v1931 = vpack.c.bf16 %v1835, %v1834
        %v1932 = vpack.c.bf16 %v1837, %v1836
        %v1933 = vpack.c.bf16 %v1839, %v1838
        %v1934 = vpack.c.bf16 %v1841, %v1840
        %v1935 = vpack.c.bf16 %v1843, %v1842
        %v1936 = vpack.c.bf16 %v1845, %v1844
        %v1937 = vpack.c.bf16 %v1847, %v1846
        %v1938 = vpack.c.bf16 %v1849, %v1848
        %v1939 = vpack.c.bf16 %v1851, %v1850
        %v1940 = vpack.c.bf16 %v1853, %v1852
        %v1941 = vpack.c.bf16 %v1855, %v1854
        %v1942 = vpack.c.bf16 %v1857, %v1856
        %v1943 = vpack.c.bf16 %v1859, %v1858
        %v1944 = vpack.c.bf16 %v1861, %v1860
        %v1945 = vpack.c.bf16 %v1863, %v1862
        %v1946 = vpack.c.bf16 %v1865, %v1864
        %v1947 = vpack.c.bf16 %v1867, %v1866
        %v1948 = vpack.c.bf16 %v1869, %v1868
        %v1949 = vpack.c.bf16 %v1871, %v1870
        %v1950 = vpack.c.bf16 %v1873, %v1872
        %v1951 = vpack.c.bf16 %v1875, %v1874
        %v1952 = vpack.c.bf16 %v1877, %v1876
        %v1953 = vpack.c.bf16 %v1879, %v1878
        %v1954 = vpack.c.bf16 %v1881, %v1880
        %v1955 = vpack.c.bf16 %v1883, %v1882
        %v1956 = vpack.c.bf16 %v1885, %v1884
        %v1957 = vpack.c.bf16 %v1887, %v1886
        %v1958 = vpack.c.bf16 %v1889, %v1888
        %v1959 = vpack.c.bf16 %v1891, %v1890
        %v1960 = vpack.c.bf16 %v1893, %v1892
        %v1961 = vpack.c.bf16 %v1895, %v1894
        %v1962 = vpack.c.bf16 %v1897, %v1896
        %v1963 = vpack.c.bf16 %v1899, %v1898
        %v2028 = vunpack.c.l.b16 %v1900
        %v2029 = vunpack.c.h.b16 %v1900
        %v2030 = vunpack.c.l.b16 %v1901
        %v2031 = vunpack.c.h.b16 %v1901
        %v2032 = vunpack.c.l.b16 %v1902
        %v2033 = vunpack.c.h.b16 %v1902
        %v2034 = vunpack.c.l.b16 %v1903
        %v2035 = vunpack.c.h.b16 %v1903
        %v2036 = vunpack.c.l.b16 %v1904
        %v2037 = vunpack.c.h.b16 %v1904
        %v2038 = vunpack.c.l.b16 %v1905
        %v2039 = vunpack.c.h.b16 %v1905
        %v2040 = vunpack.c.l.b16 %v1906
        %v2041 = vunpack.c.h.b16 %v1906
        %v2042 = vunpack.c.l.b16 %v1907
        %v2043 = vunpack.c.h.b16 %v1907
        %v2044 = vunpack.c.l.b16 %v1908
        %v2045 = vunpack.c.h.b16 %v1908
        %v2046 = vunpack.c.l.b16 %v1909
        %v2047 = vunpack.c.h.b16 %v1909
        %v2048 = vunpack.c.l.b16 %v1910
        %v2049 = vunpack.c.h.b16 %v1910
        %v2050 = vunpack.c.l.b16 %v1911
        %v2051 = vunpack.c.h.b16 %v1911
        %v2052 = vunpack.c.l.b16 %v1912
        %v2053 = vunpack.c.h.b16 %v1912
        %v2054 = vunpack.c.l.b16 %v1913
        %v2055 = vunpack.c.h.b16 %v1913
        %v2056 = vunpack.c.l.b16 %v1914
        %v2057 = vunpack.c.h.b16 %v1914
        %v2058 = vunpack.c.l.b16 %v1915
        %v2059 = vunpack.c.h.b16 %v1915
        %v2060 = vunpack.c.l.b16 %v1916
        %v2061 = vunpack.c.h.b16 %v1916
        %v2062 = vunpack.c.l.b16 %v1917
        %v2063 = vunpack.c.h.b16 %v1917
        %v2064 = vunpack.c.l.b16 %v1918
        %v2065 = vunpack.c.h.b16 %v1918
        %v2066 = vunpack.c.l.b16 %v1919
        %v2067 = vunpack.c.h.b16 %v1919
        %v2068 = vunpack.c.l.b16 %v1920
        %v2069 = vunpack.c.h.b16 %v1920
        %v2070 = vunpack.c.l.b16 %v1921
        %v2071 = vunpack.c.h.b16 %v1921
        %v2072 = vunpack.c.l.b16 %v1922
        %v2073 = vunpack.c.h.b16 %v1922
        %v2074 = vunpack.c.l.b16 %v1923
        %v2075 = vunpack.c.h.b16 %v1923
        %v2076 = vunpack.c.l.b16 %v1924
        %v2077 = vunpack.c.h.b16 %v1924
        %v2078 = vunpack.c.l.b16 %v1925
        %v2079 = vunpack.c.h.b16 %v1925
        %v2080 = vunpack.c.l.b16 %v1926
        %v2081 = vunpack.c.h.b16 %v1926
        %v2082 = vunpack.c.l.b16 %v1927
        %v2083 = vunpack.c.h.b16 %v1927
        %v2084 = vunpack.c.l.b16 %v1928
        %v2085 = vunpack.c.h.b16 %v1928
        %v2086 = vunpack.c.l.b16 %v1929
        %v2087 = vunpack.c.h.b16 %v1929
        %v2088 = vunpack.c.l.b16 %v1930
        %v2089 = vunpack.c.h.b16 %v1930
        %v2090 = vunpack.c.l.b16 %v1931
        %v2091 = vunpack.c.h.b16 %v1931
        %v2092 = vunpack.c.l.b16 %v1932
        %v2093 = vunpack.c.h.b16 %v1932
        %v2094 = vunpack.c.l.b16 %v1933
        %v2095 = vunpack.c.h.b16 %v1933
        %v2096 = vunpack.c.l.b16 %v1934
        %v2097 = vunpack.c.h.b16 %v1934
        %v2098 = vunpack.c.l.b16 %v1935
        %v2099 = vunpack.c.h.b16 %v1935
        %v2100 = vunpack.c.l.b16 %v1936
        %v2101 = vunpack.c.h.b16 %v1936
        %v2102 = vunpack.c.l.b16 %v1937
        %v2103 = vunpack.c.h.b16 %v1937
        %v2104 = vunpack.c.l.b16 %v1938
        %v2105 = vunpack.c.h.b16 %v1938
        %v2106 = vunpack.c.l.b16 %v1939
        %v2107 = vunpack.c.h.b16 %v1939
        %v2108 = vunpack.c.l.b16 %v1940
        %v2109 = vunpack.c.h.b16 %v1940
        %v2110 = vunpack.c.l.b16 %v1941
        %v2111 = vunpack.c.h.b16 %v1941
        %v2112 = vunpack.c.l.b16 %v1942
        %v2113 = vunpack.c.h.b16 %v1942
        %v2114 = vunpack.c.l.b16 %v1943
        %v2115 = vunpack.c.h.b16 %v1943
        %v2116 = vunpack.c.l.b16 %v1944
        %v2117 = vunpack.c.h.b16 %v1944
        %v2118 = vunpack.c.l.b16 %v1945
        %v2119 = vunpack.c.h.b16 %v1945
        %v2120 = vunpack.c.l.b16 %v1946
        %v2121 = vunpack.c.h.b16 %v1946
        %v2122 = vunpack.c.l.b16 %v1947
        %v2123 = vunpack.c.h.b16 %v1947
        %v2124 = vunpack.c.l.b16 %v1948
        %v2125 = vunpack.c.h.b16 %v1948
        %v2126 = vunpack.c.l.b16 %v1949
        %v2127 = vunpack.c.h.b16 %v1949
        %v2128 = vunpack.c.l.b16 %v1950
        %v2129 = vunpack.c.h.b16 %v1950
        %v2130 = vunpack.c.l.b16 %v1951
        %v2131 = vunpack.c.h.b16 %v1951
        %v2132 = vunpack.c.l.b16 %v1952
        %v2133 = vunpack.c.h.b16 %v1952
        %v2134 = vunpack.c.l.b16 %v1953
        %v2135 = vunpack.c.h.b16 %v1953
        %v2136 = vunpack.c.l.b16 %v1954
        %v2137 = vunpack.c.h.b16 %v1954
        %v2138 = vunpack.c.l.b16 %v1955
        %v2139 = vunpack.c.h.b16 %v1955
        %v2140 = vunpack.c.l.b16 %v1956
        %v2141 = vunpack.c.h.b16 %v1956
        %v2142 = vunpack.c.l.b16 %v1957
        %v2143 = vunpack.c.h.b16 %v1957
        %v2144 = vunpack.c.l.b16 %v1958
        %v2145 = vunpack.c.h.b16 %v1958
        %v2146 = vunpack.c.l.b16 %v1959
        %v2147 = vunpack.c.h.b16 %v1959
        %v2148 = vunpack.c.l.b16 %v1960
        %v2149 = vunpack.c.h.b16 %v1960
        %v2150 = vunpack.c.l.b16 %v1961
        %v2151 = vunpack.c.h.b16 %v1961
        %v2152 = vunpack.c.l.b16 %v1962
        %v2153 = vunpack.c.h.b16 %v1962
        %v2154 = vunpack.c.l.b16 %v1963
        %v2155 = vunpack.c.h.b16 %v1963
        %v2156 = vpack.c.b16 %v2028, %v2028
        %v2157 = vpack.c.b16 %v2029, %v2029
        %v2158 = vpack.c.b16 %v2030, %v2030
        %v2159 = vpack.c.b16 %v2031, %v2031
        %v2160 = vpack.c.b16 %v2032, %v2032
        %v2161 = vpack.c.b16 %v2033, %v2033
        %v2162 = vpack.c.b16 %v2034, %v2034
        %v2163 = vpack.c.b16 %v2035, %v2035
        %v2164 = vpack.c.b16 %v2036, %v2036
        %v2165 = vpack.c.b16 %v2037, %v2037
        %v2166 = vpack.c.b16 %v2038, %v2038
        %v2167 = vpack.c.b16 %v2039, %v2039
        %v2168 = vpack.c.b16 %v2040, %v2040
        %v2169 = vpack.c.b16 %v2041, %v2041
        %v2170 = vpack.c.b16 %v2042, %v2042
        %v2171 = vpack.c.b16 %v2043, %v2043
        %v2172 = vpack.c.b16 %v2044, %v2044
        %v2173 = vpack.c.b16 %v2045, %v2045
        %v2174 = vpack.c.b16 %v2046, %v2046
        %v2175 = vpack.c.b16 %v2047, %v2047
        %v2176 = vpack.c.b16 %v2048, %v2048
        %v2177 = vpack.c.b16 %v2049, %v2049
        %v2178 = vpack.c.b16 %v2050, %v2050
        %v2179 = vpack.c.b16 %v2051, %v2051
        %v2180 = vpack.c.b16 %v2052, %v2052
        %v2181 = vpack.c.b16 %v2053, %v2053
        %v2182 = vpack.c.b16 %v2054, %v2054
        %v2183 = vpack.c.b16 %v2055, %v2055
        %v2184 = vpack.c.b16 %v2056, %v2056
        %v2185 = vpack.c.b16 %v2057, %v2057
        %v2186 = vpack.c.b16 %v2058, %v2058
        %v2187 = vpack.c.b16 %v2059, %v2059
        %v2188 = vpack.c.b16 %v2060, %v2060
        %v2189 = vpack.c.b16 %v2061, %v2061
        %v2190 = vpack.c.b16 %v2062, %v2062
        %v2191 = vpack.c.b16 %v2063, %v2063
        %v2192 = vpack.c.b16 %v2064, %v2064
        %v2193 = vpack.c.b16 %v2065, %v2065
        %v2194 = vpack.c.b16 %v2066, %v2066
        %v2195 = vpack.c.b16 %v2067, %v2067
        %v2196 = vpack.c.b16 %v2068, %v2068
        %v2197 = vpack.c.b16 %v2069, %v2069
        %v2198 = vpack.c.b16 %v2070, %v2070
        %v2199 = vpack.c.b16 %v2071, %v2071
        %v2200 = vpack.c.b16 %v2072, %v2072
        %v2201 = vpack.c.b16 %v2073, %v2073
        %v2202 = vpack.c.b16 %v2074, %v2074
        %v2203 = vpack.c.b16 %v2075, %v2075
        %v2204 = vpack.c.b16 %v2076, %v2076
        %v2205 = vpack.c.b16 %v2077, %v2077
        %v2206 = vpack.c.b16 %v2078, %v2078
        %v2207 = vpack.c.b16 %v2079, %v2079
        %v2208 = vpack.c.b16 %v2080, %v2080
        %v2209 = vpack.c.b16 %v2081, %v2081
        %v2210 = vpack.c.b16 %v2082, %v2082
        %v2211 = vpack.c.b16 %v2083, %v2083
        %v2212 = vpack.c.b16 %v2084, %v2084
        %v2213 = vpack.c.b16 %v2085, %v2085
        %v2214 = vpack.c.b16 %v2086, %v2086
        %v2215 = vpack.c.b16 %v2087, %v2087
        %v2216 = vpack.c.b16 %v2088, %v2088
        %v2217 = vpack.c.b16 %v2089, %v2089
        %v2218 = vpack.c.b16 %v2090, %v2090
        %v2219 = vpack.c.b16 %v2091, %v2091
        %v2220 = vpack.c.b16 %v2092, %v2092
        %v2221 = vpack.c.b16 %v2093, %v2093
        %v2222 = vpack.c.b16 %v2094, %v2094
        %v2223 = vpack.c.b16 %v2095, %v2095
        %v2224 = vpack.c.b16 %v2096, %v2096
        %v2225 = vpack.c.b16 %v2097, %v2097
        %v2226 = vpack.c.b16 %v2098, %v2098
        %v2227 = vpack.c.b16 %v2099, %v2099
        %v2228 = vpack.c.b16 %v2100, %v2100
        %v2229 = vpack.c.b16 %v2101, %v2101
        %v2230 = vpack.c.b16 %v2102, %v2102
        %v2231 = vpack.c.b16 %v2103, %v2103
        %v2232 = vpack.c.b16 %v2104, %v2104
        %v2233 = vpack.c.b16 %v2105, %v2105
        %v2234 = vpack.c.b16 %v2106, %v2106
        %v2235 = vpack.c.b16 %v2107, %v2107
        %v2236 = vpack.c.b16 %v2108, %v2108
        %v2237 = vpack.c.b16 %v2109, %v2109
        %v2238 = vpack.c.b16 %v2110, %v2110
        %v2239 = vpack.c.b16 %v2111, %v2111
        %v2240 = vpack.c.b16 %v2112, %v2112
        %v2241 = vpack.c.b16 %v2113, %v2113
        %v2242 = vpack.c.b16 %v2114, %v2114
        %v2243 = vpack.c.b16 %v2115, %v2115
        %v2244 = vpack.c.b16 %v2116, %v2116
        %v2245 = vpack.c.b16 %v2117, %v2117
        %v2246 = vpack.c.b16 %v2118, %v2118
        %v2247 = vpack.c.b16 %v2119, %v2119
        %v2248 = vpack.c.b16 %v2120, %v2120
        %v2249 = vpack.c.b16 %v2121, %v2121
        %v2250 = vpack.c.b16 %v2122, %v2122
        %v2251 = vpack.c.b16 %v2123, %v2123
        %v2252 = vpack.c.b16 %v2124, %v2124
        %v2253 = vpack.c.b16 %v2125, %v2125
        %v2254 = vpack.c.b16 %v2126, %v2126
        %v2255 = vpack.c.b16 %v2127, %v2127
        %v2256 = vpack.c.b16 %v2128, %v2128
        %v2257 = vpack.c.b16 %v2129, %v2129
        %v2258 = vpack.c.b16 %v2130, %v2130
        %v2259 = vpack.c.b16 %v2131, %v2131
        %v2260 = vpack.c.b16 %v2132, %v2132
        %v2261 = vpack.c.b16 %v2133, %v2133
        %v2262 = vpack.c.b16 %v2134, %v2134
        %v2263 = vpack.c.b16 %v2135, %v2135
        %v2264 = vpack.c.b16 %v2136, %v2136
        %v2265 = vpack.c.b16 %v2137, %v2137
        %v2266 = vpack.c.b16 %v2138, %v2138
        %v2267 = vpack.c.b16 %v2139, %v2139
        %v2268 = vpack.c.b16 %v2140, %v2140
        %v2269 = vpack.c.b16 %v2141, %v2141
        %v2270 = vpack.c.b16 %v2142, %v2142
        %v2271 = vpack.c.b16 %v2143, %v2143
        %v2272 = vpack.c.b16 %v2144, %v2144
        %v2273 = vpack.c.b16 %v2145, %v2145
        %v2274 = vpack.c.b16 %v2146, %v2146
        %v2275 = vpack.c.b16 %v2147, %v2147
        %v2276 = vpack.c.b16 %v2148, %v2148
        %v2277 = vpack.c.b16 %v2149, %v2149
        %v2278 = vpack.c.b16 %v2150, %v2150
        %v2279 = vpack.c.b16 %v2151, %v2151
        %v2280 = vpack.c.b16 %v2152, %v2152
        %v2281 = vpack.c.b16 %v2153, %v2153
        %v2282 = vpack.c.b16 %v2154, %v2154
        %v2283 = vpack.c.b16 %v2155, %v2155
        %vm2412 = vcmask 257024
        %2413 = vst.msk [vmem:[%s165] sm:$0xf] %vm2412, %v2156
        %2414 = vst.msk [vmem:[%s165 + $0x4] sm:$0xf] %vm2412, %v2157
        %2415 = vst.msk [vmem:[%s165 + $0x8] sm:$0xf] %vm2412, %v2158
        %2416 = vst.msk [vmem:[%s165 + $0xc] sm:$0xf] %vm2412, %v2159
        %2417 = vst.msk [vmem:[%s165 + $0x10] sm:$0xf] %vm2412, %v2160
        %2418 = vst.msk [vmem:[%s165 + $0x14] sm:$0xf] %vm2412, %v2161
        %2419 = vst.msk [vmem:[%s165 + $0x18] sm:$0xf] %vm2412, %v2162
        %2420 = vst.msk [vmem:[%s165 + $0x1c] sm:$0xf] %vm2412, %v2163
        %2421 = vst.msk [vmem:[%s165 + $0x20] sm:$0xf] %vm2412, %v2164
        %2422 = vst.msk [vmem:[%s165 + $0x24] sm:$0xf] %vm2412, %v2165
        %2423 = vst.msk [vmem:[%s165 + $0x28] sm:$0xf] %vm2412, %v2166
        %2424 = vst.msk [vmem:[%s165 + $0x2c] sm:$0xf] %vm2412, %v2167
        %2425 = vst.msk [vmem:[%s165 + $0x30] sm:$0xf] %vm2412, %v2168
        %2426 = vst.msk [vmem:[%s165 + $0x34] sm:$0xf] %vm2412, %v2169
        %2427 = vst.msk [vmem:[%s165 + $0x38] sm:$0xf] %vm2412, %v2170
        %2428 = vst.msk [vmem:[%s165 + $0x3c] sm:$0xf] %vm2412, %v2171
        %2429 = vst.msk [vmem:[%s165 + $0x40] sm:$0xf] %vm2412, %v2172
        %2430 = vst.msk [vmem:[%s165 + $0x44] sm:$0xf] %vm2412, %v2173
        %2431 = vst.msk [vmem:[%s165 + $0x48] sm:$0xf] %vm2412, %v2174
        %2432 = vst.msk [vmem:[%s165 + $0x4c] sm:$0xf] %vm2412, %v2175
        %2433 = vst.msk [vmem:[%s165 + $0x50] sm:$0xf] %vm2412, %v2176
        %2434 = vst.msk [vmem:[%s165 + $0x54] sm:$0xf] %vm2412, %v2177
        %2435 = vst.msk [vmem:[%s165 + $0x58] sm:$0xf] %vm2412, %v2178
        %2436 = vst.msk [vmem:[%s165 + $0x5c] sm:$0xf] %vm2412, %v2179
        %2437 = vst.msk [vmem:[%s165 + $0x60] sm:$0xf] %vm2412, %v2180
        %2438 = vst.msk [vmem:[%s165 + $0x64] sm:$0xf] %vm2412, %v2181
        %2439 = vst.msk [vmem:[%s165 + $0x68] sm:$0xf] %vm2412, %v2182
        %2440 = vst.msk [vmem:[%s165 + $0x6c] sm:$0xf] %vm2412, %v2183
        %2441 = vst.msk [vmem:[%s165 + $0x70] sm:$0xf] %vm2412, %v2184
        %2442 = vst.msk [vmem:[%s165 + $0x74] sm:$0xf] %vm2412, %v2185
        %2443 = vst.msk [vmem:[%s165 + $0x78] sm:$0xf] %vm2412, %v2186
        %2444 = vst.msk [vmem:[%s165 + $0x7c] sm:$0xf] %vm2412, %v2187
        %2445 = vst.msk [vmem:[%s165 + $0x80] sm:$0xf] %vm2412, %v2188
        %2446 = vst.msk [vmem:[%s165 + $0x84] sm:$0xf] %vm2412, %v2189
        %2447 = vst.msk [vmem:[%s165 + $0x88] sm:$0xf] %vm2412, %v2190
        %2448 = vst.msk [vmem:[%s165 + $0x8c] sm:$0xf] %vm2412, %v2191
        %2449 = vst.msk [vmem:[%s165 + $0x90] sm:$0xf] %vm2412, %v2192
        %2450 = vst.msk [vmem:[%s165 + $0x94] sm:$0xf] %vm2412, %v2193
        %2451 = vst.msk [vmem:[%s165 + $0x98] sm:$0xf] %vm2412, %v2194
        %2452 = vst.msk [vmem:[%s165 + $0x9c] sm:$0xf] %vm2412, %v2195
        %2453 = vst.msk [vmem:[%s165 + $0xa0] sm:$0xf] %vm2412, %v2196
        %2454 = vst.msk [vmem:[%s165 + $0xa4] sm:$0xf] %vm2412, %v2197
        %2455 = vst.msk [vmem:[%s165 + $0xa8] sm:$0xf] %vm2412, %v2198
        %2456 = vst.msk [vmem:[%s165 + $0xac] sm:$0xf] %vm2412, %v2199
        %2457 = vst.msk [vmem:[%s165 + $0xb0] sm:$0xf] %vm2412, %v2200
        %2458 = vst.msk [vmem:[%s165 + $0xb4] sm:$0xf] %vm2412, %v2201
        %2459 = vst.msk [vmem:[%s165 + $0xb8] sm:$0xf] %vm2412, %v2202
        %2460 = vst.msk [vmem:[%s165 + $0xbc] sm:$0xf] %vm2412, %v2203
        %2461 = vst.msk [vmem:[%s165 + $0xc0] sm:$0xf] %vm2412, %v2204
        %2462 = vst.msk [vmem:[%s165 + $0xc4] sm:$0xf] %vm2412, %v2205
        %2463 = vst.msk [vmem:[%s165 + $0xc8] sm:$0xf] %vm2412, %v2206
        %2464 = vst.msk [vmem:[%s165 + $0xcc] sm:$0xf] %vm2412, %v2207
        %2465 = vst.msk [vmem:[%s165 + $0xd0] sm:$0xf] %vm2412, %v2208
        %2466 = vst.msk [vmem:[%s165 + $0xd4] sm:$0xf] %vm2412, %v2209
        %2467 = vst.msk [vmem:[%s165 + $0xd8] sm:$0xf] %vm2412, %v2210
        %2468 = vst.msk [vmem:[%s165 + $0xdc] sm:$0xf] %vm2412, %v2211
        %2469 = vst.msk [vmem:[%s165 + $0xe0] sm:$0xf] %vm2412, %v2212
        %2470 = vst.msk [vmem:[%s165 + $0xe4] sm:$0xf] %vm2412, %v2213
        %2471 = vst.msk [vmem:[%s165 + $0xe8] sm:$0xf] %vm2412, %v2214
        %2472 = vst.msk [vmem:[%s165 + $0xec] sm:$0xf] %vm2412, %v2215
        %2473 = vst.msk [vmem:[%s165 + $0xf0] sm:$0xf] %vm2412, %v2216
        %2474 = vst.msk [vmem:[%s165 + $0xf4] sm:$0xf] %vm2412, %v2217
        %2475 = vst.msk [vmem:[%s165 + $0xf8] sm:$0xf] %vm2412, %v2218
        %2476 = vst.msk [vmem:[%s165 + $0xfc] sm:$0xf] %vm2412, %v2219
        %2477 = vst.msk [vmem:[%s165 + $0x100] sm:$0xf] %vm2412, %v2220
        %2478 = vst.msk [vmem:[%s165 + $0x104] sm:$0xf] %vm2412, %v2221
        %2479 = vst.msk [vmem:[%s165 + $0x108] sm:$0xf] %vm2412, %v2222
        %2480 = vst.msk [vmem:[%s165 + $0x10c] sm:$0xf] %vm2412, %v2223
        %2481 = vst.msk [vmem:[%s165 + $0x110] sm:$0xf] %vm2412, %v2224
        %2482 = vst.msk [vmem:[%s165 + $0x114] sm:$0xf] %vm2412, %v2225
        %2483 = vst.msk [vmem:[%s165 + $0x118] sm:$0xf] %vm2412, %v2226
        %2484 = vst.msk [vmem:[%s165 + $0x11c] sm:$0xf] %vm2412, %v2227
        %2485 = vst.msk [vmem:[%s165 + $0x120] sm:$0xf] %vm2412, %v2228
        %2486 = vst.msk [vmem:[%s165 + $0x124] sm:$0xf] %vm2412, %v2229
        %2487 = vst.msk [vmem:[%s165 + $0x128] sm:$0xf] %vm2412, %v2230
        %2488 = vst.msk [vmem:[%s165 + $0x12c] sm:$0xf] %vm2412, %v2231
        %2489 = vst.msk [vmem:[%s165 + $0x130] sm:$0xf] %vm2412, %v2232
        %2490 = vst.msk [vmem:[%s165 + $0x134] sm:$0xf] %vm2412, %v2233
        %2491 = vst.msk [vmem:[%s165 + $0x138] sm:$0xf] %vm2412, %v2234
        %2492 = vst.msk [vmem:[%s165 + $0x13c] sm:$0xf] %vm2412, %v2235
        %2493 = vst.msk [vmem:[%s165 + $0x140] sm:$0xf] %vm2412, %v2236
        %2494 = vst.msk [vmem:[%s165 + $0x144] sm:$0xf] %vm2412, %v2237
        %2495 = vst.msk [vmem:[%s165 + $0x148] sm:$0xf] %vm2412, %v2238
        %2496 = vst.msk [vmem:[%s165 + $0x14c] sm:$0xf] %vm2412, %v2239
        %2497 = vst.msk [vmem:[%s165 + $0x150] sm:$0xf] %vm2412, %v2240
        %2498 = vst.msk [vmem:[%s165 + $0x154] sm:$0xf] %vm2412, %v2241
        %2499 = vst.msk [vmem:[%s165 + $0x158] sm:$0xf] %vm2412, %v2242
        %2500 = vst.msk [vmem:[%s165 + $0x15c] sm:$0xf] %vm2412, %v2243
        %2501 = vst.msk [vmem:[%s165 + $0x160] sm:$0xf] %vm2412, %v2244
        %2502 = vst.msk [vmem:[%s165 + $0x164] sm:$0xf] %vm2412, %v2245
        %2503 = vst.msk [vmem:[%s165 + $0x168] sm:$0xf] %vm2412, %v2246
        %2504 = vst.msk [vmem:[%s165 + $0x16c] sm:$0xf] %vm2412, %v2247
        %2505 = vst.msk [vmem:[%s165 + $0x170] sm:$0xf] %vm2412, %v2248
        %2506 = vst.msk [vmem:[%s165 + $0x174] sm:$0xf] %vm2412, %v2249
        %2507 = vst.msk [vmem:[%s165 + $0x178] sm:$0xf] %vm2412, %v2250
        %2508 = vst.msk [vmem:[%s165 + $0x17c] sm:$0xf] %vm2412, %v2251
        %2509 = vst.msk [vmem:[%s165 + $0x180] sm:$0xf] %vm2412, %v2252
        %2510 = vst.msk [vmem:[%s165 + $0x184] sm:$0xf] %vm2412, %v2253
        %2511 = vst.msk [vmem:[%s165 + $0x188] sm:$0xf] %vm2412, %v2254
        %2512 = vst.msk [vmem:[%s165 + $0x18c] sm:$0xf] %vm2412, %v2255
        %2513 = vst.msk [vmem:[%s165 + $0x190] sm:$0xf] %vm2412, %v2256
        %2514 = vst.msk [vmem:[%s165 + $0x194] sm:$0xf] %vm2412, %v2257
        %2515 = vst.msk [vmem:[%s165 + $0x198] sm:$0xf] %vm2412, %v2258
        %2516 = vst.msk [vmem:[%s165 + $0x19c] sm:$0xf] %vm2412, %v2259
        %2517 = vst.msk [vmem:[%s165 + $0x1a0] sm:$0xf] %vm2412, %v2260
        %2518 = vst.msk [vmem:[%s165 + $0x1a4] sm:$0xf] %vm2412, %v2261
        %2519 = vst.msk [vmem:[%s165 + $0x1a8] sm:$0xf] %vm2412, %v2262
        %2520 = vst.msk [vmem:[%s165 + $0x1ac] sm:$0xf] %vm2412, %v2263
        %2521 = vst.msk [vmem:[%s165 + $0x1b0] sm:$0xf] %vm2412, %v2264
        %2522 = vst.msk [vmem:[%s165 + $0x1b4] sm:$0xf] %vm2412, %v2265
        %2523 = vst.msk [vmem:[%s165 + $0x1b8] sm:$0xf] %vm2412, %v2266
        %2524 = vst.msk [vmem:[%s165 + $0x1bc] sm:$0xf] %vm2412, %v2267
        %2525 = vst.msk [vmem:[%s165 + $0x1c0] sm:$0xf] %vm2412, %v2268
        %2526 = vst.msk [vmem:[%s165 + $0x1c4] sm:$0xf] %vm2412, %v2269
        %2527 = vst.msk [vmem:[%s165 + $0x1c8] sm:$0xf] %vm2412, %v2270
        %2528 = vst.msk [vmem:[%s165 + $0x1cc] sm:$0xf] %vm2412, %v2271
        %2529 = vst.msk [vmem:[%s165 + $0x1d0] sm:$0xf] %vm2412, %v2272
        %2530 = vst.msk [vmem:[%s165 + $0x1d4] sm:$0xf] %vm2412, %v2273
        %2531 = vst.msk [vmem:[%s165 + $0x1d8] sm:$0xf] %vm2412, %v2274
        %2532 = vst.msk [vmem:[%s165 + $0x1dc] sm:$0xf] %vm2412, %v2275
        %2533 = vst.msk [vmem:[%s165 + $0x1e0] sm:$0xf] %vm2412, %v2276
        %2534 = vst.msk [vmem:[%s165 + $0x1e4] sm:$0xf] %vm2412, %v2277
        %2535 = vst.msk [vmem:[%s165 + $0x1e8] sm:$0xf] %vm2412, %v2278
        %2536 = vst.msk [vmem:[%s165 + $0x1ec] sm:$0xf] %vm2412, %v2279
        %2537 = vst.msk [vmem:[%s165 + $0x1f0] sm:$0xf] %vm2412, %v2280
        %2538 = vst.msk [vmem:[%s165 + $0x1f4] sm:$0xf] %vm2412, %v2281
        %2539 = vst.msk [vmem:[%s165 + $0x1f8] sm:$0xf] %vm2412, %v2282
        %2540 = vst.msk [vmem:[%s165 + $0x1fc] sm:$0xf] %vm2412, %v2283
        %s2541 = sand.u32 %s95, 1
        %s2542 = scalar_lea.sflag [#allocation6], %s2541
        %s2543 = sand.u32 %s95, 1
        %s2544 = smul.addr %s2543, 512
        %s2545 = scalar_lea.vmem [#allocation5], %s2544
        // Predicated region
        $region33: #{tpu_custom_call.1} parent=31 // pred_check
          %p2546 = pneg %p105
        $region34: #{tpu_custom_call.1} parent=31 // pred_check_branch
          %2548 = sbr.rel (%p2546) target = $region36
        $region35: #{tpu_custom_call.1} parent=31 // pred_region
          %s2550 = ssub.s32 8192, 8192
          %2551 = vsyncadd %s2542, %s2550
          %s2552 = smul.addr %s19, 128
          %s2553 = smul.addr %s2552, 64
          %s2554 = scalar_lea.hbm %s4, %s2553
          %s2555 = sshll.u32 %s2545, 4
          %s2556 = int_to_ptr.vmem [resolvable:$true] %s2555
          %2561 = dma.vmem_to_hbm [thread:$0]  %s2556, 8192, %s2554, %s2542, 64, 64, 4
        $region36: #{tpu_custom_call.1} parent=31 // pred_fallthru
          _
      $region32: #{tpu_custom_call.1} parent=5 // pred_fallthru
        _
      %p2562 = scmp.le.s32.totalorder 2, %s14
      // Predicated region
      $region37: #{tpu_custom_call.1} parent=5 // pred_check
        %p2563 = pneg %p2562
      $region38: #{tpu_custom_call.1} parent=5 // pred_check_branch
        %2565 = sbr.rel (%p2563) target = $region40
      $region39: #{tpu_custom_call.1} parent=5 // pred_region
        %s2566 = ssub.s32 %s14, 2
        // Predicated region
        $region41: #{tpu_custom_call.1} parent=39 // pred_check
          %p2567 = pneg %p111
        $region42: #{tpu_custom_call.1} parent=39 // pred_check_branch
          %2569 = sbr.rel (%p2567) target = $region44
        $region43: #{tpu_custom_call.1} parent=39 // pred_region
          %s2570 = sand.u32 %s96, 1
          %s2571 = scalar_lea.sflag [#allocation6], %s2570
          %s2572 = sand.u32 %s96, 1
          %s2573 = smul.addr %s2572, 512
          %s2574 = scalar_lea.vmem [#allocation5], %s2573
          %2575 = dma.done %s2571, 8192
        $region44: #{tpu_custom_call.1} parent=39 // pred_fallthru
          _
      $region40: #{tpu_custom_call.1} parent=5 // pred_fallthru
        _
    $region6: #{tpu_custom_call.1} parent=1 // loop_footer
      %s18 = sadd.s32 1, %s14
    $region7: #{tpu_custom_call.1} parent=1 // loop_footer_branch
      %13 = sbr.rel target = $region3
    $region8: #{tpu_custom_call.1} parent=1 // loop_exit
      _
    %2576 = vsyncpa [#allocation6], 1
    %s2577 = scalar_lea.sflag [#allocation6], 1
    %2578 = vsyncpa %s2577, 1

</llo_original>
